<compile_context>
chip_gen: v5e
topology: v5e:2x2
jax: 0.10.0
libtpu: 0.0.40
codegen_flags: <defaults>
</compile_context>

<pallas_src>
import functools

import jax
import jax.numpy as jnp
from jax.experimental import pallas as pl
from jax.experimental.pallas import tpu as pltpu


def _lstm_model_kernel(
    x_ref,        # (T*B, Din)   time-major, flattened: row = t*B + b
    wih1_ref,     # (Din, 4*H1)
    whh1_ref,     # (H1, 4*H1)
    b1_ref,       # (1, 4*H1)    b_ih + b_hh (layer 1)
    w2_ref,       # (H1+H2, 4*H2)  fused [W_ih2; W_hh2]
    b2_ref,       # (1, 4*H2)    b_ih + b_hh (layer 2)
    h2_out_ref,   # (B, H2)      final layer-2 hidden state
    xp_scr,       # VMEM scratch (T*B, 4*H1)
    *, T, B, H1, H2,
):
    # Hoisted non-recurrent input projection for layer 1: one wide MXU matmul
    # over all timesteps (M = T*B), bias folded in once.
    xp_scr[...] = (
        jnp.dot(x_ref[...], wih1_ref[...], preferred_element_type=jnp.float32)
        + b1_ref[...]
    )

    # Hoisted bias broadcast for layer 2 (JAX does not CSE broadcast_in_dim).
    b2 = jnp.broadcast_to(b2_ref[...], (B, 4 * H2))

    def gate_update(gates, c, H):
        # PyTorch gate order along the 4*H axis: i, f, g, o
        i_g = jax.nn.sigmoid(gates[:, 0 * H:1 * H])
        f_g = jax.nn.sigmoid(gates[:, 1 * H:2 * H])
        g_g = jnp.tanh(gates[:, 2 * H:3 * H])
        o_g = jax.nn.sigmoid(gates[:, 3 * H:4 * H])
        c_new = f_g * c + i_g * g_g
        h_new = o_g * jnp.tanh(c_new)
        return h_new, c_new

    h1 = jnp.zeros((B, H1), jnp.float32)
    c1 = jnp.zeros((B, H1), jnp.float32)
    h2 = jnp.zeros((B, H2), jnp.float32)
    c2 = jnp.zeros((B, H2), jnp.float32)

    # Fully unrolled time loop (T is small and static); only the recurrent
    # matmuls remain in the serial chain.
    for t in range(T):
        # Layer 1: precomputed input projection + recurrent matmul.
        gates1 = xp_scr[t * B:(t + 1) * B, :] + jnp.dot(
            h1, whh1_ref[...], preferred_element_type=jnp.float32
        )
        h1, c1 = gate_update(gates1, c1, H1)

        # Layer 2: input + recurrent matmuls fused into a single MXU push.
        xh = jnp.concatenate([h1, h2], axis=-1)  # (B, H1+H2)
        gates2 = (
            jnp.dot(xh, w2_ref[...], preferred_element_type=jnp.float32) + b2
        )
        h2, c2 = gate_update(gates2, c2, H2)

    h2_out_ref[...] = h2


def lstm_model_forward(x, params):
    """x: (B, T, input_size) float32, batch_first like PyTorch. Returns (B, 1)."""
    B, T, Din = x.shape
    assert T >= 1, "sequence length must be >= 1"
    H1 = params["whh1"].shape[0]
    H2 = params["whh2"].shape[0]

    # Pad batch to the 8-row f32 sublane tile.
    B_pad = ((B + 7) // 8) * 8
    if B_pad != B:
        x = jnp.pad(x, ((0, B_pad - B), (0, 0), (0, 0)))

    # Time-major, flattened: row index = t * B_pad + b.
    x_tm = jnp.transpose(x, (1, 0, 2)).reshape(T * B_pad, Din)

    # Fused layer-2 weight: [W_ih2; W_hh2]  ->  (H1 + H2, 4*H2).
    w2 = jnp.concatenate([params["wih2"], params["whh2"]], axis=0)

    kernel = functools.partial(_lstm_model_kernel, T=T, B=B_pad, H1=H1, H2=H2)

    def full2d(a):
        return pl.BlockSpec(a.shape, lambda i: (0, 0))

    h2_final = pl.pallas_call(
        kernel,
        out_shape=jax.ShapeDtypeStruct((B_pad, H2), jnp.float32),
        grid=(1,),
        in_specs=[
            full2d(x_tm),
            full2d(params["wih1"]),
            full2d(params["whh1"]),
            full2d(params["b1"]),
            full2d(w2),
            full2d(params["b2"]),
        ],
        out_specs=pl.BlockSpec((B_pad, H2), lambda i: (0, 0)),
        scratch_shapes=[
            pltpu.VMEM((T * B_pad, 4 * H1), jnp.float32),  # hoisted x-projection
        ],
    )(x_tm, params["wih1"], params["whh1"], params["b1"], w2, params["b2"])

    # Tiny FC head outside the kernel (XLA fuses it); slice off batch padding.
    h2 = h2_final[:B]
    z = jnp.maximum(h2 @ params["wfc1"] + params["bfc1"], 0.0)
    return z @ params["wfc2"] + params["bfc2"]


def init_params(key, input_size, hidden_size1=64, hidden_size2=32, output_size=1):
    """Deterministic init; weights stored pre-transposed for x @ W layout."""
    ks = jax.random.split(key, 12)

    def u(k, shape, bound):
        return jax.random.uniform(k, shape, jnp.float32, -bound, bound)

    b1v = 1.0 / jnp.sqrt(hidden_size1)
    b2v = 1.0 / jnp.sqrt(hidden_size2)
    bf1 = 1.0 / jnp.sqrt(hidden_size2)
    bf2 = 1.0 / jnp.sqrt(16)

    params = {
        # LSTM layer 1: gates ordered [i, f, g, o] along the 4*H axis
        "wih1": u(ks[0], (input_size, 4 * hidden_size1), b1v),
        "whh1": u(ks[1], (hidden_size1, 4 * hidden_size1), b1v),
        "b1": u(ks[2], (1, 4 * hidden_size1), b1v)
              + u(ks[3], (1, 4 * hidden_size1), b1v),   # b_ih + b_hh
        # LSTM layer 2
        "wih2": u(ks[4], (hidden_size1, 4 * hidden_size2), b2v),
        "whh2": u(ks[5], (hidden_size2, 4 * hidden_size2), b2v),
        "b2": u(ks[6], (1, 4 * hidden_size2), b2v)
              + u(ks[7], (1, 4 * hidden_size2), b2v),
        # FC head
        "wfc1": u(ks[8], (hidden_size2, 16), bf1),
        "bfc1": u(ks[9], (1, 16), bf1),
        "wfc2": u(ks[10], (16, output_size), bf2),
        "bfc2": u(ks[11], (1, output_size), bf2),
    }
    return params


def _reference_forward(x, params):
    """Pure-JAX reference of the same forward pass (for a sanity check)."""
    B, T, _ = x.shape
    H1 = params["whh1"].shape[0]
    H2 = params["whh2"].shape[0]

    def cell(x_t, h, c, wih, whh, b, H):
        g = x_t @ wih + h @ whh + b
        i = jax.nn.sigmoid(g[:, 0 * H:1 * H])
        f = jax.nn.sigmoid(g[:, 1 * H:2 * H])
        gg = jnp.tanh(g[:, 2 * H:3 * H])
        o = jax.nn.sigmoid(g[:, 3 * H:4 * H])
        c = f * c + i * gg
        h = o * jnp.tanh(c)
        return h, c

    def step(carry, x_t):
        h1, c1, h2, c2 = carry
        h1, c1 = cell(x_t, h1, c1, params["wih1"], params["whh1"], params["b1"], H1)
        h2, c2 = cell(h1, h2, c2, params["wih2"], params["whh2"], params["b2"], H2)
        return (h1, c1, h2, c2), None

    init = (
        jnp.zeros((B, H1)), jnp.zeros((B, H1)),
        jnp.zeros((B, H2)), jnp.zeros((B, H2)),
    )
    (h1, c1, h2, c2), _ = jax.lax.scan(step, init, jnp.transpose(x, (1, 0, 2)))
    z = jnp.maximum(h2 @ params["wfc1"] + params["bfc1"], 0.0)
    return z @ params["wfc2"] + params["bfc2"]


if __name__ == "__main__":
    key = jax.random.PRNGKey(0)
    k_x, k_p = jax.random.split(key)

    B, T, INPUT_SIZE = 4, 8, 8          # small shapes; hidden sizes per module defaults
    params = init_params(k_p, INPUT_SIZE, hidden_size1=64, hidden_size2=32, output_size=1)
    x = jax.random.normal(k_x, (B, T, INPUT_SIZE), dtype=jnp.float32)

    fwd = jax.jit(lstm_model_forward)
    out = fwd(x, params)
    out = jax.block_until_ready(out)

    ref = _reference_forward(x, params)
    assert out.shape == (B, 1)
    assert jnp.allclose(out, ref, atol=1e-4, rtol=1e-4), (out, ref)

    print("KERNEL_OK")
</pallas_src>

<mosaic_0001>
module attributes {stable_mosaic.version = 11 : i64} {
  func.func @_lstm_model_kernel(%arg0: i32, %arg1: memref<64x8xf32, #tpu.memory_space<vmem>>, %arg2: memref<8x256xf32, #tpu.memory_space<vmem>>, %arg3: memref<64x256xf32, #tpu.memory_space<vmem>>, %arg4: memref<1x256xf32, #tpu.memory_space<vmem>>, %arg5: memref<96x128xf32, #tpu.memory_space<vmem>>, %arg6: memref<1x128xf32, #tpu.memory_space<vmem>>, %arg7: memref<8x32xf32, #tpu.memory_space<vmem>>, %arg8: memref<64x256xf32, #tpu.memory_space<vmem>>) attributes {dimension_semantics = [#tpu.dimension_semantics<arbitrary>], iteration_bounds = array<i64: 1>, scalar_prefetch = 0 : i64, scratch_operands = 1 : i64, tpu.core_type = #tpu.core_type<tc>, window_params = [{pipeline_mode = #tpu.pipeline_mode<synchronous>, transform_indices = @transform_0, window_bounds = array<i64: 64, 8>}, {pipeline_mode = #tpu.pipeline_mode<synchronous>, transform_indices = @transform_1, window_bounds = array<i64: 8, 256>}, {pipeline_mode = #tpu.pipeline_mode<synchronous>, transform_indices = @transform_2, window_bounds = array<i64: 64, 256>}, {pipeline_mode = #tpu.pipeline_mode<synchronous>, transform_indices = @transform_3, window_bounds = array<i64: 1, 256>}, {pipeline_mode = #tpu.pipeline_mode<synchronous>, transform_indices = @transform_4, window_bounds = array<i64: 96, 128>}, {pipeline_mode = #tpu.pipeline_mode<synchronous>, transform_indices = @transform_5, window_bounds = array<i64: 1, 128>}, {pipeline_mode = #tpu.pipeline_mode<synchronous>, transform_indices = @transform_6, window_bounds = array<i64: 8, 32>}]} {
    %c0 = arith.constant 0 : index
    %c0_0 = arith.constant 0 : index
    %0 = vector.load %arg1[%c0, %c0_0] : memref<64x8xf32, #tpu.memory_space<vmem>>, vector<64x8xf32>
    %c0_1 = arith.constant 0 : index
    %c0_2 = arith.constant 0 : index
    %1 = vector.load %arg2[%c0_1, %c0_2] : memref<8x256xf32, #tpu.memory_space<vmem>>, vector<8x256xf32>
    %cst = arith.constant dense<0.000000e+00> : vector<64x256xf32>
    %2 = tpu.matmul %0, %1, %cst {dimension_numbers = #tpu.dot_dimension_numbers<[1], [0], [0], [1], [0, 0, 1, 1], [], []>} : vector<64x8xf32>, vector<8x256xf32>, vector<64x256xf32> -> vector<64x256xf32>
    %c0_3 = arith.constant 0 : index
    %c0_4 = arith.constant 0 : index
    %3 = vector.load %arg4[%c0_3, %c0_4] : memref<1x256xf32, #tpu.memory_space<vmem>>, vector<1x256xf32>
    %4 = vector.broadcast %3 : vector<1x256xf32> to vector<64x256xf32>
    %5 = arith.addf %2, %4 : vector<64x256xf32>
    %c0_5 = arith.constant 0 : index
    %c0_6 = arith.constant 0 : index
    %6 = vector.load %arg8[%c0_5, %c0_6] : memref<64x256xf32, #tpu.memory_space<vmem>>, vector<64x256xf32>
    tpu.vector_store %arg8[%c0_5, %c0_6], %5 {strides = array<i32>} : memref<64x256xf32, #tpu.memory_space<vmem>>, vector<64x256xf32>,
    %c0_7 = arith.constant 0 : index
    %c0_8 = arith.constant 0 : index
    %7 = vector.load %arg6[%c0_7, %c0_8] : memref<1x128xf32, #tpu.memory_space<vmem>>, vector<1x128xf32>
    %8 = vector.shape_cast %7 : vector<1x128xf32> to vector<1x128xf32>
    %9 = vector.broadcast %8 : vector<1x128xf32> to vector<8x128xf32>
    %cst_9 = arith.constant 0.000000e+00 : f32
    %10 = vector.broadcast %cst_9 : f32 to vector<8x64xf32>
    %cst_10 = arith.constant 0.000000e+00 : f32
    %11 = vector.broadcast %cst_10 : f32 to vector<8x64xf32>
    %cst_11 = arith.constant 0.000000e+00 : f32
    %12 = vector.broadcast %cst_11 : f32 to vector<8x32xf32>
    %cst_12 = arith.constant 0.000000e+00 : f32
    %13 = vector.broadcast %cst_12 : f32 to vector<8x32xf32>
    %c0_13 = arith.constant 0 : index
    %c0_14 = arith.constant 0 : index
    %14 = vector.load %arg8[%c0_13, %c0_14] : memref<64x256xf32, #tpu.memory_space<vmem>>, vector<8x256xf32>
    %c0_15 = arith.constant 0 : index
    %c0_16 = arith.constant 0 : index
    %15 = vector.load %arg3[%c0_15, %c0_16] : memref<64x256xf32, #tpu.memory_space<vmem>>, vector<64x256xf32>
    %cst_17 = arith.constant dense<0.000000e+00> : vector<8x256xf32>
    %16 = tpu.matmul %10, %15, %cst_17 {dimension_numbers = #tpu.dot_dimension_numbers<[1], [0], [0], [1], [0, 0, 1, 1], [], []>} : vector<8x64xf32>, vector<64x256xf32>, vector<8x256xf32> -> vector<8x256xf32>
    %17 = arith.addf %14, %16 : vector<8x256xf32>
    %18 = vector.extract_strided_slice %17 {offsets = [0, 0], sizes = [8, 64], strides = [1, 1]} : vector<8x256xf32> to vector<8x64xf32>
    %19 = arith.negf %18 : vector<8x64xf32>
    %20 = math.exp %19 : vector<8x64xf32>
    %cst_18 = arith.constant 1.000000e+00 : f32
    %21 = vector.broadcast %cst_18 : f32 to vector<8x64xf32>
    %22 = arith.addf %21, %20 : vector<8x64xf32>
    %23 = arith.divf %21, %22 : vector<8x64xf32>
    %24 = vector.extract_strided_slice %17 {offsets = [0, 64], sizes = [8, 64], strides = [1, 1]} : vector<8x256xf32> to vector<8x64xf32>
    %25 = arith.negf %24 : vector<8x64xf32>
    %26 = math.exp %25 : vector<8x64xf32>
    %cst_19 = arith.constant 1.000000e+00 : f32
    %27 = vector.broadcast %cst_19 : f32 to vector<8x64xf32>
    %28 = arith.addf %27, %26 : vector<8x64xf32>
    %29 = arith.divf %27, %28 : vector<8x64xf32>
    %30 = vector.extract_strided_slice %17 {offsets = [0, 128], sizes = [8, 64], strides = [1, 1]} : vector<8x256xf32> to vector<8x64xf32>
    %31 = math.tanh %30 : vector<8x64xf32>
    %32 = vector.extract_strided_slice %17 {offsets = [0, 192], sizes = [8, 64], strides = [1, 1]} : vector<8x256xf32> to vector<8x64xf32>
    %33 = arith.negf %32 : vector<8x64xf32>
    %34 = math.exp %33 : vector<8x64xf32>
    %cst_20 = arith.constant 1.000000e+00 : f32
    %35 = vector.broadcast %cst_20 : f32 to vector<8x64xf32>
    %36 = arith.addf %35, %34 : vector<8x64xf32>
    %37 = arith.divf %35, %36 : vector<8x64xf32>
    %38 = arith.mulf %29, %11 : vector<8x64xf32>
    %39 = arith.mulf %23, %31 : vector<8x64xf32>
    %40 = arith.addf %38, %39 : vector<8x64xf32>
    %41 = math.tanh %40 : vector<8x64xf32>
    %42 = arith.mulf %37, %41 : vector<8x64xf32>
    %43 = tpu.concatenate %42, %12 in 1 : vector<8x64xf32>, vector<8x32xf32> -> vector<8x96xf32>
    %c0_21 = arith.constant 0 : index
    %c0_22 = arith.constant 0 : index
    %44 = vector.load %arg5[%c0_21, %c0_22] : memref<96x128xf32, #tpu.memory_space<vmem>>, vector<96x128xf32>
    %cst_23 = arith.constant dense<0.000000e+00> : vector<8x128xf32>
    %45 = tpu.matmul %43, %44, %cst_23 {dimension_numbers = #tpu.dot_dimension_numbers<[1], [0], [0], [1], [0, 0, 1, 1], [], []>} : vector<8x96xf32>, vector<96x128xf32>, vector<8x128xf32> -> vector<8x128xf32>
    %46 = arith.addf %45, %9 : vector<8x128xf32>
    %47 = vector.extract_strided_slice %46 {offsets = [0, 0], sizes = [8, 32], strides = [1, 1]} : vector<8x128xf32> to vector<8x32xf32>
    %48 = arith.negf %47 : vector<8x32xf32>
    %49 = math.exp %48 : vector<8x32xf32>
    %cst_24 = arith.constant 1.000000e+00 : f32
    %50 = vector.broadcast %cst_24 : f32 to vector<8x32xf32>
    %51 = arith.addf %50, %49 : vector<8x32xf32>
    %52 = arith.divf %50, %51 : vector<8x32xf32>
    %53 = vector.extract_strided_slice %46 {offsets = [0, 32], sizes = [8, 32], strides = [1, 1]} : vector<8x128xf32> to vector<8x32xf32>
    %54 = arith.negf %53 : vector<8x32xf32>
    %55 = math.exp %54 : vector<8x32xf32>
    %cst_25 = arith.constant 1.000000e+00 : f32
    %56 = vector.broadcast %cst_25 : f32 to vector<8x32xf32>
    %57 = arith.addf %56, %55 : vector<8x32xf32>
    %58 = arith.divf %56, %57 : vector<8x32xf32>
    %59 = vector.extract_strided_slice %46 {offsets = [0, 64], sizes = [8, 32], strides = [1, 1]} : vector<8x128xf32> to vector<8x32xf32>
    %60 = math.tanh %59 : vector<8x32xf32>
    %61 = vector.extract_strided_slice %46 {offsets = [0, 96], sizes = [8, 32], strides = [1, 1]} : vector<8x128xf32> to vector<8x32xf32>
    %62 = arith.negf %61 : vector<8x32xf32>
    %63 = math.exp %62 : vector<8x32xf32>
    %cst_26 = arith.constant 1.000000e+00 : f32
    %64 = vector.broadcast %cst_26 : f32 to vector<8x32xf32>
    %65 = arith.addf %64, %63 : vector<8x32xf32>
    %66 = arith.divf %64, %65 : vector<8x32xf32>
    %67 = arith.mulf %58, %13 : vector<8x32xf32>
    %68 = arith.mulf %52, %60 : vector<8x32xf32>
    %69 = arith.addf %67, %68 : vector<8x32xf32>
    %70 = math.tanh %69 : vector<8x32xf32>
    %71 = arith.mulf %66, %70 : vector<8x32xf32>
    %c8 = arith.constant 8 : index
    %c0_27 = arith.constant 0 : index
    %72 = vector.load %arg8[%c8, %c0_27] : memref<64x256xf32, #tpu.memory_space<vmem>>, vector<8x256xf32>
    %c0_28 = arith.constant 0 : index
    %c0_29 = arith.constant 0 : index
    %73 = vector.load %arg3[%c0_28, %c0_29] : memref<64x256xf32, #tpu.memory_space<vmem>>, vector<64x256xf32>
    %cst_30 = arith.constant dense<0.000000e+00> : vector<8x256xf32>
    %74 = tpu.matmul %42, %73, %cst_30 {dimension_numbers = #tpu.dot_dimension_numbers<[1], [0], [0], [1], [0, 0, 1, 1], [], []>} : vector<8x64xf32>, vector<64x256xf32>, vector<8x256xf32> -> vector<8x256xf32>
    %75 = arith.addf %72, %74 : vector<8x256xf32>
    %76 = vector.extract_strided_slice %75 {offsets = [0, 0], sizes = [8, 64], strides = [1, 1]} : vector<8x256xf32> to vector<8x64xf32>
    %77 = arith.negf %76 : vector<8x64xf32>
    %78 = math.exp %77 : vector<8x64xf32>
    %cst_31 = arith.constant 1.000000e+00 : f32
    %79 = vector.broadcast %cst_31 : f32 to vector<8x64xf32>
    %80 = arith.addf %79, %78 : vector<8x64xf32>
    %81 = arith.divf %79, %80 : vector<8x64xf32>
    %82 = vector.extract_strided_slice %75 {offsets = [0, 64], sizes = [8, 64], strides = [1, 1]} : vector<8x256xf32> to vector<8x64xf32>
    %83 = arith.negf %82 : vector<8x64xf32>
    %84 = math.exp %83 : vector<8x64xf32>
    %cst_32 = arith.constant 1.000000e+00 : f32
    %85 = vector.broadcast %cst_32 : f32 to vector<8x64xf32>
    %86 = arith.addf %85, %84 : vector<8x64xf32>
    %87 = arith.divf %85, %86 : vector<8x64xf32>
    %88 = vector.extract_strided_slice %75 {offsets = [0, 128], sizes = [8, 64], strides = [1, 1]} : vector<8x256xf32> to vector<8x64xf32>
    %89 = math.tanh %88 : vector<8x64xf32>
    %90 = vector.extract_strided_slice %75 {offsets = [0, 192], sizes = [8, 64], strides = [1, 1]} : vector<8x256xf32> to vector<8x64xf32>
    %91 = arith.negf %90 : vector<8x64xf32>
    %92 = math.exp %91 : vector<8x64xf32>
    %cst_33 = arith.constant 1.000000e+00 : f32
    %93 = vector.broadcast %cst_33 : f32 to vector<8x64xf32>
    %94 = arith.addf %93, %92 : vector<8x64xf32>
    %95 = arith.divf %93, %94 : vector<8x64xf32>
    %96 = arith.mulf %87, %40 : vector<8x64xf32>
    %97 = arith.mulf %81, %89 : vector<8x64xf32>
    %98 = arith.addf %96, %97 : vector<8x64xf32>
    %99 = math.tanh %98 : vector<8x64xf32>
    %100 = arith.mulf %95, %99 : vector<8x64xf32>
    %101 = tpu.concatenate %100, %71 in 1 : vector<8x64xf32>, vector<8x32xf32> -> vector<8x96xf32>
    %c0_34 = arith.constant 0 : index
    %c0_35 = arith.constant 0 : index
    %102 = vector.load %arg5[%c0_34, %c0_35] : memref<96x128xf32, #tpu.memory_space<vmem>>, vector<96x128xf32>
    %cst_36 = arith.constant dense<0.000000e+00> : vector<8x128xf32>
    %103 = tpu.matmul %101, %102, %cst_36 {dimension_numbers = #tpu.dot_dimension_numbers<[1], [0], [0], [1], [0, 0, 1, 1], [], []>} : vector<8x96xf32>, vector<96x128xf32>, vector<8x128xf32> -> vector<8x128xf32>
    %104 = arith.addf %103, %9 : vector<8x128xf32>
    %105 = vector.extract_strided_slice %104 {offsets = [0, 0], sizes = [8, 32], strides = [1, 1]} : vector<8x128xf32> to vector<8x32xf32>
    %106 = arith.negf %105 : vector<8x32xf32>
    %107 = math.exp %106 : vector<8x32xf32>
    %cst_37 = arith.constant 1.000000e+00 : f32
    %108 = vector.broadcast %cst_37 : f32 to vector<8x32xf32>
    %109 = arith.addf %108, %107 : vector<8x32xf32>
    %110 = arith.divf %108, %109 : vector<8x32xf32>
    %111 = vector.extract_strided_slice %104 {offsets = [0, 32], sizes = [8, 32], strides = [1, 1]} : vector<8x128xf32> to vector<8x32xf32>
    %112 = arith.negf %111 : vector<8x32xf32>
    %113 = math.exp %112 : vector<8x32xf32>
    %cst_38 = arith.constant 1.000000e+00 : f32
    %114 = vector.broadcast %cst_38 : f32 to vector<8x32xf32>
    %115 = arith.addf %114, %113 : vector<8x32xf32>
    %116 = arith.divf %114, %115 : vector<8x32xf32>
    %117 = vector.extract_strided_slice %104 {offsets = [0, 64], sizes = [8, 32], strides = [1, 1]} : vector<8x128xf32> to vector<8x32xf32>
    %118 = math.tanh %117 : vector<8x32xf32>
    %119 = vector.extract_strided_slice %104 {offsets = [0, 96], sizes = [8, 32], strides = [1, 1]} : vector<8x128xf32> to vector<8x32xf32>
    %120 = arith.negf %119 : vector<8x32xf32>
    %121 = math.exp %120 : vector<8x32xf32>
    %cst_39 = arith.constant 1.000000e+00 : f32
    %122 = vector.broadcast %cst_39 : f32 to vector<8x32xf32>
    %123 = arith.addf %122, %121 : vector<8x32xf32>
    %124 = arith.divf %122, %123 : vector<8x32xf32>
    %125 = arith.mulf %116, %69 : vector<8x32xf32>
    %126 = arith.mulf %110, %118 : vector<8x32xf32>
    %127 = arith.addf %125, %126 : vector<8x32xf32>
    %128 = math.tanh %127 : vector<8x32xf32>
    %129 = arith.mulf %124, %128 : vector<8x32xf32>
    %c16 = arith.constant 16 : index
    %c0_40 = arith.constant 0 : index
    %130 = vector.load %arg8[%c16, %c0_40] : memref<64x256xf32, #tpu.memory_space<vmem>>, vector<8x256xf32>
    %c0_41 = arith.constant 0 : index
    %c0_42 = arith.constant 0 : index
    %131 = vector.load %arg3[%c0_41, %c0_42] : memref<64x256xf32, #tpu.memory_space<vmem>>, vector<64x256xf32>
    %cst_43 = arith.constant dense<0.000000e+00> : vector<8x256xf32>
    %132 = tpu.matmul %100, %131, %cst_43 {dimension_numbers = #tpu.dot_dimension_numbers<[1], [0], [0], [1], [0, 0, 1, 1], [], []>} : vector<8x64xf32>, vector<64x256xf32>, vector<8x256xf32> -> vector<8x256xf32>
    %133 = arith.addf %130, %132 : vector<8x256xf32>
    %134 = vector.extract_strided_slice %133 {offsets = [0, 0], sizes = [8, 64], strides = [1, 1]} : vector<8x256xf32> to vector<8x64xf32>
    %135 = arith.negf %134 : vector<8x64xf32>
    %136 = math.exp %135 : vector<8x64xf32>
    %cst_44 = arith.constant 1.000000e+00 : f32
    %137 = vector.broadcast %cst_44 : f32 to vector<8x64xf32>
    %138 = arith.addf %137, %136 : vector<8x64xf32>
    %139 = arith.divf %137, %138 : vector<8x64xf32>
    %140 = vector.extract_strided_slice %133 {offsets = [0, 64], sizes = [8, 64], strides = [1, 1]} : vector<8x256xf32> to vector<8x64xf32>
    %141 = arith.negf %140 : vector<8x64xf32>
    %142 = math.exp %141 : vector<8x64xf32>
    %cst_45 = arith.constant 1.000000e+00 : f32
    %143 = vector.broadcast %cst_45 : f32 to vector<8x64xf32>
    %144 = arith.addf %143, %142 : vector<8x64xf32>
    %145 = arith.divf %143, %144 : vector<8x64xf32>
    %146 = vector.extract_strided_slice %133 {offsets = [0, 128], sizes = [8, 64], strides = [1, 1]} : vector<8x256xf32> to vector<8x64xf32>
    %147 = math.tanh %146 : vector<8x64xf32>
    %148 = vector.extract_strided_slice %133 {offsets = [0, 192], sizes = [8, 64], strides = [1, 1]} : vector<8x256xf32> to vector<8x64xf32>
    %149 = arith.negf %148 : vector<8x64xf32>
    %150 = math.exp %149 : vector<8x64xf32>
    %cst_46 = arith.constant 1.000000e+00 : f32
    %151 = vector.broadcast %cst_46 : f32 to vector<8x64xf32>
    %152 = arith.addf %151, %150 : vector<8x64xf32>
    %153 = arith.divf %151, %152 : vector<8x64xf32>
    %154 = arith.mulf %145, %98 : vector<8x64xf32>
    %155 = arith.mulf %139, %147 : vector<8x64xf32>
    %156 = arith.addf %154, %155 : vector<8x64xf32>
    %157 = math.tanh %156 : vector<8x64xf32>
    %158 = arith.mulf %153, %157 : vector<8x64xf32>
    %159 = tpu.concatenate %158, %129 in 1 : vector<8x64xf32>, vector<8x32xf32> -> vector<8x96xf32>
    %c0_47 = arith.constant 0 : index
    %c0_48 = arith.constant 0 : index
    %160 = vector.load %arg5[%c0_47, %c0_48] : memref<96x128xf32, #tpu.memory_space<vmem>>, vector<96x128xf32>
    %cst_49 = arith.constant dense<0.000000e+00> : vector<8x128xf32>
    %161 = tpu.matmul %159, %160, %cst_49 {dimension_numbers = #tpu.dot_dimension_numbers<[1], [0], [0], [1], [0, 0, 1, 1], [], []>} : vector<8x96xf32>, vector<96x128xf32>, vector<8x128xf32> -> vector<8x128xf32>
    %162 = arith.addf %161, %9 : vector<8x128xf32>
    %163 = vector.extract_strided_slice %162 {offsets = [0, 0], sizes = [8, 32], strides = [1, 1]} : vector<8x128xf32> to vector<8x32xf32>
    %164 = arith.negf %163 : vector<8x32xf32>
    %165 = math.exp %164 : vector<8x32xf32>
    %cst_50 = arith.constant 1.000000e+00 : f32
    %166 = vector.broadcast %cst_50 : f32 to vector<8x32xf32>
    %167 = arith.addf %166, %165 : vector<8x32xf32>
    %168 = arith.divf %166, %167 : vector<8x32xf32>
    %169 = vector.extract_strided_slice %162 {offsets = [0, 32], sizes = [8, 32], strides = [1, 1]} : vector<8x128xf32> to vector<8x32xf32>
    %170 = arith.negf %169 : vector<8x32xf32>
    %171 = math.exp %170 : vector<8x32xf32>
    %cst_51 = arith.constant 1.000000e+00 : f32
    %172 = vector.broadcast %cst_51 : f32 to vector<8x32xf32>
    %173 = arith.addf %172, %171 : vector<8x32xf32>
    %174 = arith.divf %172, %173 : vector<8x32xf32>
    %175 = vector.extract_strided_slice %162 {offsets = [0, 64], sizes = [8, 32], strides = [1, 1]} : vector<8x128xf32> to vector<8x32xf32>
    %176 = math.tanh %175 : vector<8x32xf32>
    %177 = vector.extract_strided_slice %162 {offsets = [0, 96], sizes = [8, 32], strides = [1, 1]} : vector<8x128xf32> to vector<8x32xf32>
    %178 = arith.negf %177 : vector<8x32xf32>
    %179 = math.exp %178 : vector<8x32xf32>
    %cst_52 = arith.constant 1.000000e+00 : f32
    %180 = vector.broadcast %cst_52 : f32 to vector<8x32xf32>
    %181 = arith.addf %180, %179 : vector<8x32xf32>
    %182 = arith.divf %180, %181 : vector<8x32xf32>
    %183 = arith.mulf %174, %127 : vector<8x32xf32>
    %184 = arith.mulf %168, %176 : vector<8x32xf32>
    %185 = arith.addf %183, %184 : vector<8x32xf32>
    %186 = math.tanh %185 : vector<8x32xf32>
    %187 = arith.mulf %182, %186 : vector<8x32xf32>
    %c24 = arith.constant 24 : index
    %c0_53 = arith.constant 0 : index
    %188 = vector.load %arg8[%c24, %c0_53] : memref<64x256xf32, #tpu.memory_space<vmem>>, vector<8x256xf32>
    %c0_54 = arith.constant 0 : index
    %c0_55 = arith.constant 0 : index
    %189 = vector.load %arg3[%c0_54, %c0_55] : memref<64x256xf32, #tpu.memory_space<vmem>>, vector<64x256xf32>
    %cst_56 = arith.constant dense<0.000000e+00> : vector<8x256xf32>
    %190 = tpu.matmul %158, %189, %cst_56 {dimension_numbers = #tpu.dot_dimension_numbers<[1], [0], [0], [1], [0, 0, 1, 1], [], []>} : vector<8x64xf32>, vector<64x256xf32>, vector<8x256xf32> -> vector<8x256xf32>
    %191 = arith.addf %188, %190 : vector<8x256xf32>
    %192 = vector.extract_strided_slice %191 {offsets = [0, 0], sizes = [8, 64], strides = [1, 1]} : vector<8x256xf32> to vector<8x64xf32>
    %193 = arith.negf %192 : vector<8x64xf32>
    %194 = math.exp %193 : vector<8x64xf32>
    %cst_57 = arith.constant 1.000000e+00 : f32
    %195 = vector.broadcast %cst_57 : f32 to vector<8x64xf32>
    %196 = arith.addf %195, %194 : vector<8x64xf32>
    %197 = arith.divf %195, %196 : vector<8x64xf32>
    %198 = vector.extract_strided_slice %191 {offsets = [0, 64], sizes = [8, 64], strides = [1, 1]} : vector<8x256xf32> to vector<8x64xf32>
    %199 = arith.negf %198 : vector<8x64xf32>
    %200 = math.exp %199 : vector<8x64xf32>
    %cst_58 = arith.constant 1.000000e+00 : f32
    %201 = vector.broadcast %cst_58 : f32 to vector<8x64xf32>
    %202 = arith.addf %201, %200 : vector<8x64xf32>
    %203 = arith.divf %201, %202 : vector<8x64xf32>
    %204 = vector.extract_strided_slice %191 {offsets = [0, 128], sizes = [8, 64], strides = [1, 1]} : vector<8x256xf32> to vector<8x64xf32>
    %205 = math.tanh %204 : vector<8x64xf32>
    %206 = vector.extract_strided_slice %191 {offsets = [0, 192], sizes = [8, 64], strides = [1, 1]} : vector<8x256xf32> to vector<8x64xf32>
    %207 = arith.negf %206 : vector<8x64xf32>
    %208 = math.exp %207 : vector<8x64xf32>
    %cst_59 = arith.constant 1.000000e+00 : f32
    %209 = vector.broadcast %cst_59 : f32 to vector<8x64xf32>
    %210 = arith.addf %209, %208 : vector<8x64xf32>
    %211 = arith.divf %209, %210 : vector<8x64xf32>
    %212 = arith.mulf %203, %156 : vector<8x64xf32>
    %213 = arith.mulf %197, %205 : vector<8x64xf32>
    %214 = arith.addf %212, %213 : vector<8x64xf32>
    %215 = math.tanh %214 : vector<8x64xf32>
    %216 = arith.mulf %211, %215 : vector<8x64xf32>
    %217 = tpu.concatenate %216, %187 in 1 : vector<8x64xf32>, vector<8x32xf32> -> vector<8x96xf32>
    %c0_60 = arith.constant 0 : index
    %c0_61 = arith.constant 0 : index
    %218 = vector.load %arg5[%c0_60, %c0_61] : memref<96x128xf32, #tpu.memory_space<vmem>>, vector<96x128xf32>
    %cst_62 = arith.constant dense<0.000000e+00> : vector<8x128xf32>
    %219 = tpu.matmul %217, %218, %cst_62 {dimension_numbers = #tpu.dot_dimension_numbers<[1], [0], [0], [1], [0, 0, 1, 1], [], []>} : vector<8x96xf32>, vector<96x128xf32>, vector<8x128xf32> -> vector<8x128xf32>
    %220 = arith.addf %219, %9 : vector<8x128xf32>
    %221 = vector.extract_strided_slice %220 {offsets = [0, 0], sizes = [8, 32], strides = [1, 1]} : vector<8x128xf32> to vector<8x32xf32>
    %222 = arith.negf %221 : vector<8x32xf32>
    %223 = math.exp %222 : vector<8x32xf32>
    %cst_63 = arith.constant 1.000000e+00 : f32
    %224 = vector.broadcast %cst_63 : f32 to vector<8x32xf32>
    %225 = arith.addf %224, %223 : vector<8x32xf32>
    %226 = arith.divf %224, %225 : vector<8x32xf32>
    %227 = vector.extract_strided_slice %220 {offsets = [0, 32], sizes = [8, 32], strides = [1, 1]} : vector<8x128xf32> to vector<8x32xf32>
    %228 = arith.negf %227 : vector<8x32xf32>
    %229 = math.exp %228 : vector<8x32xf32>
    %cst_64 = arith.constant 1.000000e+00 : f32
    %230 = vector.broadcast %cst_64 : f32 to vector<8x32xf32>
    %231 = arith.addf %230, %229 : vector<8x32xf32>
    %232 = arith.divf %230, %231 : vector<8x32xf32>
    %233 = vector.extract_strided_slice %220 {offsets = [0, 64], sizes = [8, 32], strides = [1, 1]} : vector<8x128xf32> to vector<8x32xf32>
    %234 = math.tanh %233 : vector<8x32xf32>
    %235 = vector.extract_strided_slice %220 {offsets = [0, 96], sizes = [8, 32], strides = [1, 1]} : vector<8x128xf32> to vector<8x32xf32>
    %236 = arith.negf %235 : vector<8x32xf32>
    %237 = math.exp %236 : vector<8x32xf32>
    %cst_65 = arith.constant 1.000000e+00 : f32
    %238 = vector.broadcast %cst_65 : f32 to vector<8x32xf32>
    %239 = arith.addf %238, %237 : vector<8x32xf32>
    %240 = arith.divf %238, %239 : vector<8x32xf32>
    %241 = arith.mulf %232, %185 : vector<8x32xf32>
    %242 = arith.mulf %226, %234 : vector<8x32xf32>
    %243 = arith.addf %241, %242 : vector<8x32xf32>
    %244 = math.tanh %243 : vector<8x32xf32>
    %245 = arith.mulf %240, %244 : vector<8x32xf32>
    %c32 = arith.constant 32 : index
    %c0_66 = arith.constant 0 : index
    %246 = vector.load %arg8[%c32, %c0_66] : memref<64x256xf32, #tpu.memory_space<vmem>>, vector<8x256xf32>
    %c0_67 = arith.constant 0 : index
    %c0_68 = arith.constant 0 : index
    %247 = vector.load %arg3[%c0_67, %c0_68] : memref<64x256xf32, #tpu.memory_space<vmem>>, vector<64x256xf32>
    %cst_69 = arith.constant dense<0.000000e+00> : vector<8x256xf32>
    %248 = tpu.matmul %216, %247, %cst_69 {dimension_numbers = #tpu.dot_dimension_numbers<[1], [0], [0], [1], [0, 0, 1, 1], [], []>} : vector<8x64xf32>, vector<64x256xf32>, vector<8x256xf32> -> vector<8x256xf32>
    %249 = arith.addf %246, %248 : vector<8x256xf32>
    %250 = vector.extract_strided_slice %249 {offsets = [0, 0], sizes = [8, 64], strides = [1, 1]} : vector<8x256xf32> to vector<8x64xf32>
    %251 = arith.negf %250 : vector<8x64xf32>
    %252 = math.exp %251 : vector<8x64xf32>
    %cst_70 = arith.constant 1.000000e+00 : f32
    %253 = vector.broadcast %cst_70 : f32 to vector<8x64xf32>
    %254 = arith.addf %253, %252 : vector<8x64xf32>
    %255 = arith.divf %253, %254 : vector<8x64xf32>
    %256 = vector.extract_strided_slice %249 {offsets = [0, 64], sizes = [8, 64], strides = [1, 1]} : vector<8x256xf32> to vector<8x64xf32>
    %257 = arith.negf %256 : vector<8x64xf32>
    %258 = math.exp %257 : vector<8x64xf32>
    %cst_71 = arith.constant 1.000000e+00 : f32
    %259 = vector.broadcast %cst_71 : f32 to vector<8x64xf32>
    %260 = arith.addf %259, %258 : vector<8x64xf32>
    %261 = arith.divf %259, %260 : vector<8x64xf32>
    %262 = vector.extract_strided_slice %249 {offsets = [0, 128], sizes = [8, 64], strides = [1, 1]} : vector<8x256xf32> to vector<8x64xf32>
    %263 = math.tanh %262 : vector<8x64xf32>
    %264 = vector.extract_strided_slice %249 {offsets = [0, 192], sizes = [8, 64], strides = [1, 1]} : vector<8x256xf32> to vector<8x64xf32>
    %265 = arith.negf %264 : vector<8x64xf32>
    %266 = math.exp %265 : vector<8x64xf32>
    %cst_72 = arith.constant 1.000000e+00 : f32
    %267 = vector.broadcast %cst_72 : f32 to vector<8x64xf32>
    %268 = arith.addf %267, %266 : vector<8x64xf32>
    %269 = arith.divf %267, %268 : vector<8x64xf32>
    %270 = arith.mulf %261, %214 : vector<8x64xf32>
    %271 = arith.mulf %255, %263 : vector<8x64xf32>
    %272 = arith.addf %270, %271 : vector<8x64xf32>
    %273 = math.tanh %272 : vector<8x64xf32>
    %274 = arith.mulf %269, %273 : vector<8x64xf32>
    %275 = tpu.concatenate %274, %245 in 1 : vector<8x64xf32>, vector<8x32xf32> -> vector<8x96xf32>
    %c0_73 = arith.constant 0 : index
    %c0_74 = arith.constant 0 : index
    %276 = vector.load %arg5[%c0_73, %c0_74] : memref<96x128xf32, #tpu.memory_space<vmem>>, vector<96x128xf32>
    %cst_75 = arith.constant dense<0.000000e+00> : vector<8x128xf32>
    %277 = tpu.matmul %275, %276, %cst_75 {dimension_numbers = #tpu.dot_dimension_numbers<[1], [0], [0], [1], [0, 0, 1, 1], [], []>} : vector<8x96xf32>, vector<96x128xf32>, vector<8x128xf32> -> vector<8x128xf32>
    %278 = arith.addf %277, %9 : vector<8x128xf32>
    %279 = vector.extract_strided_slice %278 {offsets = [0, 0], sizes = [8, 32], strides = [1, 1]} : vector<8x128xf32> to vector<8x32xf32>
    %280 = arith.negf %279 : vector<8x32xf32>
    %281 = math.exp %280 : vector<8x32xf32>
    %cst_76 = arith.constant 1.000000e+00 : f32
    %282 = vector.broadcast %cst_76 : f32 to vector<8x32xf32>
    %283 = arith.addf %282, %281 : vector<8x32xf32>
    %284 = arith.divf %282, %283 : vector<8x32xf32>
    %285 = vector.extract_strided_slice %278 {offsets = [0, 32], sizes = [8, 32], strides = [1, 1]} : vector<8x128xf32> to vector<8x32xf32>
    %286 = arith.negf %285 : vector<8x32xf32>
    %287 = math.exp %286 : vector<8x32xf32>
    %cst_77 = arith.constant 1.000000e+00 : f32
    %288 = vector.broadcast %cst_77 : f32 to vector<8x32xf32>
    %289 = arith.addf %288, %287 : vector<8x32xf32>
    %290 = arith.divf %288, %289 : vector<8x32xf32>
    %291 = vector.extract_strided_slice %278 {offsets = [0, 64], sizes = [8, 32], strides = [1, 1]} : vector<8x128xf32> to vector<8x32xf32>
    %292 = math.tanh %291 : vector<8x32xf32>
    %293 = vector.extract_strided_slice %278 {offsets = [0, 96], sizes = [8, 32], strides = [1, 1]} : vector<8x128xf32> to vector<8x32xf32>
    %294 = arith.negf %293 : vector<8x32xf32>
    %295 = math.exp %294 : vector<8x32xf32>
    %cst_78 = arith.constant 1.000000e+00 : f32
    %296 = vector.broadcast %cst_78 : f32 to vector<8x32xf32>
    %297 = arith.addf %296, %295 : vector<8x32xf32>
    %298 = arith.divf %296, %297 : vector<8x32xf32>
    %299 = arith.mulf %290, %243 : vector<8x32xf32>
    %300 = arith.mulf %284, %292 : vector<8x32xf32>
    %301 = arith.addf %299, %300 : vector<8x32xf32>
    %302 = math.tanh %301 : vector<8x32xf32>
    %303 = arith.mulf %298, %302 : vector<8x32xf32>
    %c40 = arith.constant 40 : index
    %c0_79 = arith.constant 0 : index
    %304 = vector.load %arg8[%c40, %c0_79] : memref<64x256xf32, #tpu.memory_space<vmem>>, vector<8x256xf32>
    %c0_80 = arith.constant 0 : index
    %c0_81 = arith.constant 0 : index
    %305 = vector.load %arg3[%c0_80, %c0_81] : memref<64x256xf32, #tpu.memory_space<vmem>>, vector<64x256xf32>
    %cst_82 = arith.constant dense<0.000000e+00> : vector<8x256xf32>
    %306 = tpu.matmul %274, %305, %cst_82 {dimension_numbers = #tpu.dot_dimension_numbers<[1], [0], [0], [1], [0, 0, 1, 1], [], []>} : vector<8x64xf32>, vector<64x256xf32>, vector<8x256xf32> -> vector<8x256xf32>
    %307 = arith.addf %304, %306 : vector<8x256xf32>
    %308 = vector.extract_strided_slice %307 {offsets = [0, 0], sizes = [8, 64], strides = [1, 1]} : vector<8x256xf32> to vector<8x64xf32>
    %309 = arith.negf %308 : vector<8x64xf32>
    %310 = math.exp %309 : vector<8x64xf32>
    %cst_83 = arith.constant 1.000000e+00 : f32
    %311 = vector.broadcast %cst_83 : f32 to vector<8x64xf32>
    %312 = arith.addf %311, %310 : vector<8x64xf32>
    %313 = arith.divf %311, %312 : vector<8x64xf32>
    %314 = vector.extract_strided_slice %307 {offsets = [0, 64], sizes = [8, 64], strides = [1, 1]} : vector<8x256xf32> to vector<8x64xf32>
    %315 = arith.negf %314 : vector<8x64xf32>
    %316 = math.exp %315 : vector<8x64xf32>
    %cst_84 = arith.constant 1.000000e+00 : f32
    %317 = vector.broadcast %cst_84 : f32 to vector<8x64xf32>
    %318 = arith.addf %317, %316 : vector<8x64xf32>
    %319 = arith.divf %317, %318 : vector<8x64xf32>
    %320 = vector.extract_strided_slice %307 {offsets = [0, 128], sizes = [8, 64], strides = [1, 1]} : vector<8x256xf32> to vector<8x64xf32>
    %321 = math.tanh %320 : vector<8x64xf32>
    %322 = vector.extract_strided_slice %307 {offsets = [0, 192], sizes = [8, 64], strides = [1, 1]} : vector<8x256xf32> to vector<8x64xf32>
    %323 = arith.negf %322 : vector<8x64xf32>
    %324 = math.exp %323 : vector<8x64xf32>
    %cst_85 = arith.constant 1.000000e+00 : f32
    %325 = vector.broadcast %cst_85 : f32 to vector<8x64xf32>
    %326 = arith.addf %325, %324 : vector<8x64xf32>
    %327 = arith.divf %325, %326 : vector<8x64xf32>
    %328 = arith.mulf %319, %272 : vector<8x64xf32>
    %329 = arith.mulf %313, %321 : vector<8x64xf32>
    %330 = arith.addf %328, %329 : vector<8x64xf32>
    %331 = math.tanh %330 : vector<8x64xf32>
    %332 = arith.mulf %327, %331 : vector<8x64xf32>
    %333 = tpu.concatenate %332, %303 in 1 : vector<8x64xf32>, vector<8x32xf32> -> vector<8x96xf32>
    %c0_86 = arith.constant 0 : index
    %c0_87 = arith.constant 0 : index
    %334 = vector.load %arg5[%c0_86, %c0_87] : memref<96x128xf32, #tpu.memory_space<vmem>>, vector<96x128xf32>
    %cst_88 = arith.constant dense<0.000000e+00> : vector<8x128xf32>
    %335 = tpu.matmul %333, %334, %cst_88 {dimension_numbers = #tpu.dot_dimension_numbers<[1], [0], [0], [1], [0, 0, 1, 1], [], []>} : vector<8x96xf32>, vector<96x128xf32>, vector<8x128xf32> -> vector<8x128xf32>
    %336 = arith.addf %335, %9 : vector<8x128xf32>
    %337 = vector.extract_strided_slice %336 {offsets = [0, 0], sizes = [8, 32], strides = [1, 1]} : vector<8x128xf32> to vector<8x32xf32>
    %338 = arith.negf %337 : vector<8x32xf32>
    %339 = math.exp %338 : vector<8x32xf32>
    %cst_89 = arith.constant 1.000000e+00 : f32
    %340 = vector.broadcast %cst_89 : f32 to vector<8x32xf32>
    %341 = arith.addf %340, %339 : vector<8x32xf32>
    %342 = arith.divf %340, %341 : vector<8x32xf32>
    %343 = vector.extract_strided_slice %336 {offsets = [0, 32], sizes = [8, 32], strides = [1, 1]} : vector<8x128xf32> to vector<8x32xf32>
    %344 = arith.negf %343 : vector<8x32xf32>
    %345 = math.exp %344 : vector<8x32xf32>
    %cst_90 = arith.constant 1.000000e+00 : f32
    %346 = vector.broadcast %cst_90 : f32 to vector<8x32xf32>
    %347 = arith.addf %346, %345 : vector<8x32xf32>
    %348 = arith.divf %346, %347 : vector<8x32xf32>
    %349 = vector.extract_strided_slice %336 {offsets = [0, 64], sizes = [8, 32], strides = [1, 1]} : vector<8x128xf32> to vector<8x32xf32>
    %350 = math.tanh %349 : vector<8x32xf32>
    %351 = vector.extract_strided_slice %336 {offsets = [0, 96], sizes = [8, 32], strides = [1, 1]} : vector<8x128xf32> to vector<8x32xf32>
    %352 = arith.negf %351 : vector<8x32xf32>
    %353 = math.exp %352 : vector<8x32xf32>
    %cst_91 = arith.constant 1.000000e+00 : f32
    %354 = vector.broadcast %cst_91 : f32 to vector<8x32xf32>
    %355 = arith.addf %354, %353 : vector<8x32xf32>
    %356 = arith.divf %354, %355 : vector<8x32xf32>
    %357 = arith.mulf %348, %301 : vector<8x32xf32>
    %358 = arith.mulf %342, %350 : vector<8x32xf32>
    %359 = arith.addf %357, %358 : vector<8x32xf32>
    %360 = math.tanh %359 : vector<8x32xf32>
    %361 = arith.mulf %356, %360 : vector<8x32xf32>
    %c48 = arith.constant 48 : index
    %c0_92 = arith.constant 0 : index
    %362 = vector.load %arg8[%c48, %c0_92] : memref<64x256xf32, #tpu.memory_space<vmem>>, vector<8x256xf32>
    %c0_93 = arith.constant 0 : index
    %c0_94 = arith.constant 0 : index
    %363 = vector.load %arg3[%c0_93, %c0_94] : memref<64x256xf32, #tpu.memory_space<vmem>>, vector<64x256xf32>
    %cst_95 = arith.constant dense<0.000000e+00> : vector<8x256xf32>
    %364 = tpu.matmul %332, %363, %cst_95 {dimension_numbers = #tpu.dot_dimension_numbers<[1], [0], [0], [1], [0, 0, 1, 1], [], []>} : vector<8x64xf32>, vector<64x256xf32>, vector<8x256xf32> -> vector<8x256xf32>
    %365 = arith.addf %362, %364 : vector<8x256xf32>
    %366 = vector.extract_strided_slice %365 {offsets = [0, 0], sizes = [8, 64], strides = [1, 1]} : vector<8x256xf32> to vector<8x64xf32>
    %367 = arith.negf %366 : vector<8x64xf32>
    %368 = math.exp %367 : vector<8x64xf32>
    %cst_96 = arith.constant 1.000000e+00 : f32
    %369 = vector.broadcast %cst_96 : f32 to vector<8x64xf32>
    %370 = arith.addf %369, %368 : vector<8x64xf32>
    %371 = arith.divf %369, %370 : vector<8x64xf32>
    %372 = vector.extract_strided_slice %365 {offsets = [0, 64], sizes = [8, 64], strides = [1, 1]} : vector<8x256xf32> to vector<8x64xf32>
    %373 = arith.negf %372 : vector<8x64xf32>
    %374 = math.exp %373 : vector<8x64xf32>
    %cst_97 = arith.constant 1.000000e+00 : f32
    %375 = vector.broadcast %cst_97 : f32 to vector<8x64xf32>
    %376 = arith.addf %375, %374 : vector<8x64xf32>
    %377 = arith.divf %375, %376 : vector<8x64xf32>
    %378 = vector.extract_strided_slice %365 {offsets = [0, 128], sizes = [8, 64], strides = [1, 1]} : vector<8x256xf32> to vector<8x64xf32>
    %379 = math.tanh %378 : vector<8x64xf32>
    %380 = vector.extract_strided_slice %365 {offsets = [0, 192], sizes = [8, 64], strides = [1, 1]} : vector<8x256xf32> to vector<8x64xf32>
    %381 = arith.negf %380 : vector<8x64xf32>
    %382 = math.exp %381 : vector<8x64xf32>
    %cst_98 = arith.constant 1.000000e+00 : f32
    %383 = vector.broadcast %cst_98 : f32 to vector<8x64xf32>
    %384 = arith.addf %383, %382 : vector<8x64xf32>
    %385 = arith.divf %383, %384 : vector<8x64xf32>
    %386 = arith.mulf %377, %330 : vector<8x64xf32>
    %387 = arith.mulf %371, %379 : vector<8x64xf32>
    %388 = arith.addf %386, %387 : vector<8x64xf32>
    %389 = math.tanh %388 : vector<8x64xf32>
    %390 = arith.mulf %385, %389 : vector<8x64xf32>
    %391 = tpu.concatenate %390, %361 in 1 : vector<8x64xf32>, vector<8x32xf32> -> vector<8x96xf32>
    %c0_99 = arith.constant 0 : index
    %c0_100 = arith.constant 0 : index
    %392 = vector.load %arg5[%c0_99, %c0_100] : memref<96x128xf32, #tpu.memory_space<vmem>>, vector<96x128xf32>
    %cst_101 = arith.constant dense<0.000000e+00> : vector<8x128xf32>
    %393 = tpu.matmul %391, %392, %cst_101 {dimension_numbers = #tpu.dot_dimension_numbers<[1], [0], [0], [1], [0, 0, 1, 1], [], []>} : vector<8x96xf32>, vector<96x128xf32>, vector<8x128xf32> -> vector<8x128xf32>
    %394 = arith.addf %393, %9 : vector<8x128xf32>
    %395 = vector.extract_strided_slice %394 {offsets = [0, 0], sizes = [8, 32], strides = [1, 1]} : vector<8x128xf32> to vector<8x32xf32>
    %396 = arith.negf %395 : vector<8x32xf32>
    %397 = math.exp %396 : vector<8x32xf32>
    %cst_102 = arith.constant 1.000000e+00 : f32
    %398 = vector.broadcast %cst_102 : f32 to vector<8x32xf32>
    %399 = arith.addf %398, %397 : vector<8x32xf32>
    %400 = arith.divf %398, %399 : vector<8x32xf32>
    %401 = vector.extract_strided_slice %394 {offsets = [0, 32], sizes = [8, 32], strides = [1, 1]} : vector<8x128xf32> to vector<8x32xf32>
    %402 = arith.negf %401 : vector<8x32xf32>
    %403 = math.exp %402 : vector<8x32xf32>
    %cst_103 = arith.constant 1.000000e+00 : f32
    %404 = vector.broadcast %cst_103 : f32 to vector<8x32xf32>
    %405 = arith.addf %404, %403 : vector<8x32xf32>
    %406 = arith.divf %404, %405 : vector<8x32xf32>
    %407 = vector.extract_strided_slice %394 {offsets = [0, 64], sizes = [8, 32], strides = [1, 1]} : vector<8x128xf32> to vector<8x32xf32>
    %408 = math.tanh %407 : vector<8x32xf32>
    %409 = vector.extract_strided_slice %394 {offsets = [0, 96], sizes = [8, 32], strides = [1, 1]} : vector<8x128xf32> to vector<8x32xf32>
    %410 = arith.negf %409 : vector<8x32xf32>
    %411 = math.exp %410 : vector<8x32xf32>
    %cst_104 = arith.constant 1.000000e+00 : f32
    %412 = vector.broadcast %cst_104 : f32 to vector<8x32xf32>
    %413 = arith.addf %412, %411 : vector<8x32xf32>
    %414 = arith.divf %412, %413 : vector<8x32xf32>
    %415 = arith.mulf %406, %359 : vector<8x32xf32>
    %416 = arith.mulf %400, %408 : vector<8x32xf32>
    %417 = arith.addf %415, %416 : vector<8x32xf32>
    %418 = math.tanh %417 : vector<8x32xf32>
    %419 = arith.mulf %414, %418 : vector<8x32xf32>
    %c56 = arith.constant 56 : index
    %c0_105 = arith.constant 0 : index
    %420 = vector.load %arg8[%c56, %c0_105] : memref<64x256xf32, #tpu.memory_space<vmem>>, vector<8x256xf32>
    %c0_106 = arith.constant 0 : index
    %c0_107 = arith.constant 0 : index
    %421 = vector.load %arg3[%c0_106, %c0_107] : memref<64x256xf32, #tpu.memory_space<vmem>>, vector<64x256xf32>
    %cst_108 = arith.constant dense<0.000000e+00> : vector<8x256xf32>
    %422 = tpu.matmul %390, %421, %cst_108 {dimension_numbers = #tpu.dot_dimension_numbers<[1], [0], [0], [1], [0, 0, 1, 1], [], []>} : vector<8x64xf32>, vector<64x256xf32>, vector<8x256xf32> -> vector<8x256xf32>
    %423 = arith.addf %420, %422 : vector<8x256xf32>
    %424 = vector.extract_strided_slice %423 {offsets = [0, 0], sizes = [8, 64], strides = [1, 1]} : vector<8x256xf32> to vector<8x64xf32>
    %425 = arith.negf %424 : vector<8x64xf32>
    %426 = math.exp %425 : vector<8x64xf32>
    %cst_109 = arith.constant 1.000000e+00 : f32
    %427 = vector.broadcast %cst_109 : f32 to vector<8x64xf32>
    %428 = arith.addf %427, %426 : vector<8x64xf32>
    %429 = arith.divf %427, %428 : vector<8x64xf32>
    %430 = vector.extract_strided_slice %423 {offsets = [0, 64], sizes = [8, 64], strides = [1, 1]} : vector<8x256xf32> to vector<8x64xf32>
    %431 = arith.negf %430 : vector<8x64xf32>
    %432 = math.exp %431 : vector<8x64xf32>
    %cst_110 = arith.constant 1.000000e+00 : f32
    %433 = vector.broadcast %cst_110 : f32 to vector<8x64xf32>
    %434 = arith.addf %433, %432 : vector<8x64xf32>
    %435 = arith.divf %433, %434 : vector<8x64xf32>
    %436 = vector.extract_strided_slice %423 {offsets = [0, 128], sizes = [8, 64], strides = [1, 1]} : vector<8x256xf32> to vector<8x64xf32>
    %437 = math.tanh %436 : vector<8x64xf32>
    %438 = vector.extract_strided_slice %423 {offsets = [0, 192], sizes = [8, 64], strides = [1, 1]} : vector<8x256xf32> to vector<8x64xf32>
    %439 = arith.negf %438 : vector<8x64xf32>
    %440 = math.exp %439 : vector<8x64xf32>
    %cst_111 = arith.constant 1.000000e+00 : f32
    %441 = vector.broadcast %cst_111 : f32 to vector<8x64xf32>
    %442 = arith.addf %441, %440 : vector<8x64xf32>
    %443 = arith.divf %441, %442 : vector<8x64xf32>
    %444 = arith.mulf %435, %388 : vector<8x64xf32>
    %445 = arith.mulf %429, %437 : vector<8x64xf32>
    %446 = arith.addf %444, %445 : vector<8x64xf32>
    %447 = math.tanh %446 : vector<8x64xf32>
    %448 = arith.mulf %443, %447 : vector<8x64xf32>
    %449 = tpu.concatenate %448, %419 in 1 : vector<8x64xf32>, vector<8x32xf32> -> vector<8x96xf32>
    %c0_112 = arith.constant 0 : index
    %c0_113 = arith.constant 0 : index
    %450 = vector.load %arg5[%c0_112, %c0_113] : memref<96x128xf32, #tpu.memory_space<vmem>>, vector<96x128xf32>
    %cst_114 = arith.constant dense<0.000000e+00> : vector<8x128xf32>
    %451 = tpu.matmul %449, %450, %cst_114 {dimension_numbers = #tpu.dot_dimension_numbers<[1], [0], [0], [1], [0, 0, 1, 1], [], []>} : vector<8x96xf32>, vector<96x128xf32>, vector<8x128xf32> -> vector<8x128xf32>
    %452 = arith.addf %451, %9 : vector<8x128xf32>
    %453 = vector.extract_strided_slice %452 {offsets = [0, 0], sizes = [8, 32], strides = [1, 1]} : vector<8x128xf32> to vector<8x32xf32>
    %454 = arith.negf %453 : vector<8x32xf32>
    %455 = math.exp %454 : vector<8x32xf32>
    %cst_115 = arith.constant 1.000000e+00 : f32
    %456 = vector.broadcast %cst_115 : f32 to vector<8x32xf32>
    %457 = arith.addf %456, %455 : vector<8x32xf32>
    %458 = arith.divf %456, %457 : vector<8x32xf32>
    %459 = vector.extract_strided_slice %452 {offsets = [0, 32], sizes = [8, 32], strides = [1, 1]} : vector<8x128xf32> to vector<8x32xf32>
    %460 = arith.negf %459 : vector<8x32xf32>
    %461 = math.exp %460 : vector<8x32xf32>
    %cst_116 = arith.constant 1.000000e+00 : f32
    %462 = vector.broadcast %cst_116 : f32 to vector<8x32xf32>
    %463 = arith.addf %462, %461 : vector<8x32xf32>
    %464 = arith.divf %462, %463 : vector<8x32xf32>
    %465 = vector.extract_strided_slice %452 {offsets = [0, 64], sizes = [8, 32], strides = [1, 1]} : vector<8x128xf32> to vector<8x32xf32>
    %466 = math.tanh %465 : vector<8x32xf32>
    %467 = vector.extract_strided_slice %452 {offsets = [0, 96], sizes = [8, 32], strides = [1, 1]} : vector<8x128xf32> to vector<8x32xf32>
    %468 = arith.negf %467 : vector<8x32xf32>
    %469 = math.exp %468 : vector<8x32xf32>
    %cst_117 = arith.constant 1.000000e+00 : f32
    %470 = vector.broadcast %cst_117 : f32 to vector<8x32xf32>
    %471 = arith.addf %470, %469 : vector<8x32xf32>
    %472 = arith.divf %470, %471 : vector<8x32xf32>
    %473 = arith.mulf %464, %417 : vector<8x32xf32>
    %474 = arith.mulf %458, %466 : vector<8x32xf32>
    %475 = arith.addf %473, %474 : vector<8x32xf32>
    %476 = math.tanh %475 : vector<8x32xf32>
    %477 = arith.mulf %472, %476 : vector<8x32xf32>
    %c0_118 = arith.constant 0 : index
    %c0_119 = arith.constant 0 : index
    %478 = vector.load %arg7[%c0_118, %c0_119] : memref<8x32xf32, #tpu.memory_space<vmem>>, vector<8x32xf32>
    tpu.vector_store %arg7[%c0_118, %c0_119], %477 {strides = array<i32>} : memref<8x32xf32, #tpu.memory_space<vmem>>, vector<8x32xf32>,
    return
  }
  func.func @transform_0(%arg0: i32) -> (i32, i32) {
    %c0_i32 = arith.constant 0 : i32
    %c0_i32_0 = arith.constant 0 : i32
    %c0_i32_1 = arith.constant 0 : i32
    return %c0_i32, %c0_i32_0 : i32, i32
  }
  func.func @transform_1(%arg0: i32) -> (i32, i32) {
    %c0_i32 = arith.constant 0 : i32
    %c0_i32_0 = arith.constant 0 : i32
    %c0_i32_1 = arith.constant 0 : i32
    return %c0_i32, %c0_i32_0 : i32, i32
  }
  func.func @transform_2(%arg0: i32) -> (i32, i32) {
    %c0_i32 = arith.constant 0 : i32
    %c0_i32_0 = arith.constant 0 : i32
    %c0_i32_1 = arith.constant 0 : i32
    return %c0_i32, %c0_i32_0 : i32, i32
  }
  func.func @transform_3(%arg0: i32) -> (i32, i32) {
    %c0_i32 = arith.constant 0 : i32
    %c0_i32_0 = arith.constant 0 : i32
    %c0_i32_1 = arith.constant 0 : i32
    return %c0_i32, %c0_i32_0 : i32, i32
  }
  func.func @transform_4(%arg0: i32) -> (i32, i32) {
    %c0_i32 = arith.constant 0 : i32
    %c0_i32_0 = arith.constant 0 : i32
    %c0_i32_1 = arith.constant 0 : i32
    return %c0_i32, %c0_i32_0 : i32, i32
  }
  func.func @transform_5(%arg0: i32) -> (i32, i32) {
    %c0_i32 = arith.constant 0 : i32
    %c0_i32_0 = arith.constant 0 : i32
    %c0_i32_1 = arith.constant 0 : i32
    return %c0_i32, %c0_i32_0 : i32, i32
  }
  func.func @transform_6(%arg0: i32) -> (i32, i32) {
    %c0_i32 = arith.constant 0 : i32
    %c0_i32_0 = arith.constant 0 : i32
    %c0_i32_1 = arith.constant 0 : i32
    return %c0_i32, %c0_i32_0 : i32, i32
  }
}

</mosaic_0001>

<llo_original>
// kernel: lstm_model_forward.1
$region0: #{lstm_model_forward.1}
  #allocation0 [shape = 'u32[]', space=smem, size = 0x4, offset = 0x4, fixed_abs, tag = 'smem constant byte address 0x4 - core index']
  #allocation1 [shape = 'u32[72,128]{1,0:T(1,128)}', space=vmem, size = 0x9000, scoped, tag = 'internal scratch']
  #allocation2 [shape = 'f32[64,256]{1,0:T(8,128)}', space=vmem, size = 0x10000, scoped, tag = 'scratch operand']
  %s0 = inlined_call_operand.vmem [shape: f32[64,8], index: 0, kind: input, shape index: {}]
  %s1 = inlined_call_operand.vmem [shape: f32[8,256], index: 1, kind: input, shape index: {}]
  %s2 = inlined_call_operand.vmem [shape: f32[64,256], index: 2, kind: input, shape index: {}]
  %s3 = inlined_call_operand.vmem [shape: f32[1,256], index: 3, kind: input, shape index: {}]
  %s4 = inlined_call_operand.vmem [shape: f32[96,128], index: 4, kind: input, shape index: {}]
  %s5 = inlined_call_operand.vmem [shape: f32[1,128], index: 5, kind: input, shape index: {}]
  %s6 = inlined_call_operand.vmem [shape: f32[8,32], index: 6, kind: output, shape index: {}]
  %s7 = sld [smem:[#allocation0]]
  $region34: #{lstm_model_forward.1} parent=0
    _
  %s9 = ssub.s32 1, %s7
  %s10 = scalar_select 0, %s9, %s7
  // Predicated region
  $region2: #{lstm_model_forward.1} parent=0 // pred_check
    _
  $region3: #{lstm_model_forward.1} parent=0 // pred_check_branch
    %12 = sbr.rel (0) target = $region5
  $region4: #{lstm_model_forward.1} parent=0 // pred_region
    _
  $region5: #{lstm_model_forward.1} parent=0 // pred_fallthru
    _
  // Predicated region
  $region6: #{lstm_model_forward.1} parent=0 // pred_check
    _
  $region7: #{lstm_model_forward.1} parent=0 // pred_check_branch
    %14 = sbr.rel (0) target = $region9
  $region8: #{lstm_model_forward.1} parent=0 // pred_region
    _
  $region9: #{lstm_model_forward.1} parent=0 // pred_fallthru
    _
  // Predicated region
  $region10: #{lstm_model_forward.1} parent=0 // pred_check
    _
  $region11: #{lstm_model_forward.1} parent=0 // pred_check_branch
    %16 = sbr.rel (0) target = $region13
  $region12: #{lstm_model_forward.1} parent=0 // pred_region
    _
  $region13: #{lstm_model_forward.1} parent=0 // pred_fallthru
    _
  // Predicated region
  $region14: #{lstm_model_forward.1} parent=0 // pred_check
    _
  $region15: #{lstm_model_forward.1} parent=0 // pred_check_branch
    %18 = sbr.rel (0) target = $region17
  $region16: #{lstm_model_forward.1} parent=0 // pred_region
    _
  $region17: #{lstm_model_forward.1} parent=0 // pred_fallthru
    _
  // Predicated region
  $region18: #{lstm_model_forward.1} parent=0 // pred_check
    _
  $region19: #{lstm_model_forward.1} parent=0 // pred_check_branch
    %20 = sbr.rel (0) target = $region21
  $region20: #{lstm_model_forward.1} parent=0 // pred_region
    _
  $region21: #{lstm_model_forward.1} parent=0 // pred_fallthru
    _
  // Predicated region
  $region22: #{lstm_model_forward.1} parent=0 // pred_check
    _
  $region23: #{lstm_model_forward.1} parent=0 // pred_check_branch
    %22 = sbr.rel (0) target = $region25
  $region24: #{lstm_model_forward.1} parent=0 // pred_region
    _
  $region25: #{lstm_model_forward.1} parent=0 // pred_fallthru
    _
  %v23 = vld [vmem:[%s0] sm:$0xff]
  %v24 = vld [vmem:[%s0 + $0x8] sm:$0xff]
  %v25 = vld [vmem:[%s0 + $0x10] sm:$0xff]
  %v26 = vld [vmem:[%s0 + $0x18] sm:$0xff]
  %v27 = vld [vmem:[%s0 + $0x20] sm:$0xff]
  %v28 = vld [vmem:[%s0 + $0x28] sm:$0xff]
  %v29 = vld [vmem:[%s0 + $0x30] sm:$0xff]
  %v30 = vld [vmem:[%s0 + $0x38] sm:$0xff]
  %v31 = vld [vmem:[%s1] sm:$0xff]
  %v32 = vld [vmem:[%s1 + $0x8] sm:$0xff]
  %v33 = vld [vmem:[%s3] sm:$0x3]
  %v35 = vperm.slane %v33, 0
  %v36 = vperm.slane %v33, 1
  %vm39 = vcmask 64512
  %v41 = vsel %vm39, %v23, 0
  %v44 = vsel %vm39, %v24, 0
  %v47 = vsel %vm39, %v25, 0
  %v50 = vsel %vm39, %v26, 0
  %v53 = vsel %vm39, %v27, 0
  %v56 = vsel %vm39, %v28, 0
  %v59 = vsel %vm39, %v29, 0
  %v62 = vsel %vm39, %v30, 0
  %64 = vmatpush.msra.mxu0 0.0
  %65 = vmatpush.msra.mxu0 0.0
  %66 = vmatpush.msra.mxu0 0.0
  %67 = vmatpush.msra.mxu0 0.0
  %68 = vmatpush.msra.mxu0 0.0
  %69 = vmatpush.msra.mxu0 0.0
  %70 = vmatpush.msra.mxu0 0.0
  %71 = vmatpush.msra.mxu0 0.0
  %72 = vmatpush.msra.mxu0 0.0
  %73 = vmatpush.msra.mxu0 0.0
  %74 = vmatpush.msra.mxu0 0.0
  %75 = vmatpush.msra.mxu0 0.0
  %76 = vmatpush.msra.mxu0 0.0
  %77 = vmatpush.msra.mxu0 0.0
  %78 = vmatpush.msra.mxu0 0.0
  %79 = vmatpush.msra.mxu0 %v31
  %80 = vmatmul.f32.gmra.mxu0 %v41
  %v81 = vpop.f32.mrf.mxu0
  %v82 = vadd.f32 %v35, %v81
  %83 = vmatmul.f32.gmra.mxu0 %v44
  %v84 = vpop.f32.mrf.mxu0
  %v85 = vadd.f32 %v35, %v84
  %86 = vmatmul.f32.gmra.mxu0 %v47
  %v87 = vpop.f32.mrf.mxu0
  %v88 = vadd.f32 %v35, %v87
  %89 = vmatmul.f32.gmra.mxu0 %v50
  %v90 = vpop.f32.mrf.mxu0
  %v91 = vadd.f32 %v35, %v90
  %92 = vmatmul.f32.gmra.mxu0 %v53
  %v93 = vpop.f32.mrf.mxu0
  %v94 = vadd.f32 %v35, %v93
  %95 = vmatmul.f32.gmra.mxu0 %v56
  %v96 = vpop.f32.mrf.mxu0
  %v97 = vadd.f32 %v35, %v96
  %98 = vmatmul.f32.gmra.mxu0 %v59
  %v99 = vpop.f32.mrf.mxu0
  %v100 = vadd.f32 %v35, %v99
  %101 = vmatmul.f32.gmra.mxu0 %v62
  %v102 = vpop.f32.mrf.mxu0
  %v103 = vadd.f32 %v35, %v102
  %104 = vdwg.mxu0
  %105 = vmatpush.msra.mxu0 0.0
  %106 = vmatpush.msra.mxu0 0.0
  %107 = vmatpush.msra.mxu0 0.0
  %108 = vmatpush.msra.mxu0 0.0
  %109 = vmatpush.msra.mxu0 0.0
  %110 = vmatpush.msra.mxu0 0.0
  %111 = vmatpush.msra.mxu0 0.0
  %112 = vmatpush.msra.mxu0 0.0
  %113 = vmatpush.msra.mxu0 0.0
  %114 = vmatpush.msra.mxu0 0.0
  %115 = vmatpush.msra.mxu0 0.0
  %116 = vmatpush.msra.mxu0 0.0
  %117 = vmatpush.msra.mxu0 0.0
  %118 = vmatpush.msra.mxu0 0.0
  %119 = vmatpush.msra.mxu0 0.0
  %120 = vmatpush.msra.mxu0 %v32
  %121 = vmatmul.f32.gmra.mxu0 %v41
  %v122 = vpop.f32.mrf.mxu0
  %v123 = vadd.f32 %v36, %v122
  %124 = vmatmul.f32.gmra.mxu0 %v44
  %v125 = vpop.f32.mrf.mxu0
  %v126 = vadd.f32 %v36, %v125
  %127 = vmatmul.f32.gmra.mxu0 %v47
  %v128 = vpop.f32.mrf.mxu0
  %v129 = vadd.f32 %v36, %v128
  %130 = vmatmul.f32.gmra.mxu0 %v50
  %v131 = vpop.f32.mrf.mxu0
  %v132 = vadd.f32 %v36, %v131
  %133 = vmatmul.f32.gmra.mxu0 %v53
  %v134 = vpop.f32.mrf.mxu0
  %v135 = vadd.f32 %v36, %v134
  %136 = vmatmul.f32.gmra.mxu0 %v56
  %v137 = vpop.f32.mrf.mxu0
  %v138 = vadd.f32 %v36, %v137
  %139 = vmatmul.f32.gmra.mxu0 %v59
  %v140 = vpop.f32.mrf.mxu0
  %v141 = vadd.f32 %v36, %v140
  %142 = vmatmul.f32.gmra.mxu0 %v62
  %v143 = vpop.f32.mrf.mxu0
  %v144 = vadd.f32 %v36, %v143
  %145 = vdwg.mxu0
  %146 = vst [vmem:[#allocation2] sm:$0xff] %v82
  %147 = vst [vmem:[#allocation2 + $0x8] sm:$0xff] %v123
  %148 = vst [vmem:[#allocation2 + $0x10] sm:$0xff] %v85
  %149 = vst [vmem:[#allocation2 + $0x18] sm:$0xff] %v126
  %150 = vst [vmem:[#allocation2 + $0x20] sm:$0xff] %v88
  %151 = vst [vmem:[#allocation2 + $0x28] sm:$0xff] %v129
  %152 = vst [vmem:[#allocation2 + $0x30] sm:$0xff] %v91
  %153 = vst [vmem:[#allocation2 + $0x38] sm:$0xff] %v132
  %154 = vst [vmem:[#allocation2 + $0x40] sm:$0xff] %v94
  %155 = vst [vmem:[#allocation2 + $0x48] sm:$0xff] %v135
  %156 = vst [vmem:[#allocation2 + $0x50] sm:$0xff] %v97
  %157 = vst [vmem:[#allocation2 + $0x58] sm:$0xff] %v138
  %158 = vst [vmem:[#allocation2 + $0x60] sm:$0xff] %v100
  %159 = vst [vmem:[#allocation2 + $0x68] sm:$0xff] %v141
  %160 = vst [vmem:[#allocation2 + $0x70] sm:$0xff] %v103
  %161 = vst [vmem:[#allocation2 + $0x78] sm:$0xff] %v144
  %v162 = vld [vmem:[%s5] sm:$0x1]
  %v164 = vperm.slane %v162, 0
  %v166 = vld [vmem:[#allocation2] sm:$0xff]
  %v167 = vld [vmem:[#allocation2 + $0x8] sm:$0xff]
  %v168 = vld [vmem:[%s2] sm:$0xff]
  %v169 = vld [vmem:[%s2 + $0x8] sm:$0xff]
  %v170 = vld [vmem:[%s2 + $0x10] sm:$0xff]
  %v171 = vld [vmem:[%s2 + $0x18] sm:$0xff]
  %v172 = vld [vmem:[%s2 + $0x20] sm:$0xff]
  %v173 = vld [vmem:[%s2 + $0x28] sm:$0xff]
  %v174 = vld [vmem:[%s2 + $0x30] sm:$0xff]
  %v175 = vld [vmem:[%s2 + $0x38] sm:$0xff]
  %v176 = vld [vmem:[%s2 + $0x40] sm:$0xff]
  %v177 = vld [vmem:[%s2 + $0x48] sm:$0xff]
  %v178 = vld [vmem:[%s2 + $0x50] sm:$0xff]
  %v179 = vld [vmem:[%s2 + $0x58] sm:$0xff]
  %v180 = vld [vmem:[%s2 + $0x60] sm:$0xff]
  %v181 = vld [vmem:[%s2 + $0x68] sm:$0xff]
  %v182 = vld [vmem:[%s2 + $0x70] sm:$0xff]
  %v183 = vld [vmem:[%s2 + $0x78] sm:$0xff]
  %vm184 = vcmask 523264
  %v186 = vsel %vm184, 0.0, 0
  %188 = vmatpush.msra.mxu0 0.0
  %189 = vmatpush.msra.mxu0 0.0
  %190 = vmatpush.msra.mxu0 0.0
  %191 = vmatpush.msra.mxu0 0.0
  %192 = vmatpush.msra.mxu0 0.0
  %193 = vmatpush.msra.mxu0 0.0
  %194 = vmatpush.msra.mxu0 0.0
  %195 = vmatpush.msra.mxu0 0.0
  %196 = vmatpush.msra.mxu0 %v182
  %197 = vmatpush.msra.mxu0 %v180
  %198 = vmatpush.msra.mxu0 %v178
  %199 = vmatpush.msra.mxu0 %v176
  %200 = vmatpush.msra.mxu0 %v174
  %201 = vmatpush.msra.mxu0 %v172
  %202 = vmatpush.msra.mxu0 %v170
  %203 = vmatpush.msra.mxu0 %v168
  %204 = vmatmul.f32.gmra.mxu0 %v186
  %v205 = vpop.f32.mrf.mxu0
  %v206 = vadd.f32 0.0, %v205
  %207 = vdwg.mxu0
  %208 = vmatpush.msra.mxu0 0.0
  %209 = vmatpush.msra.mxu0 0.0
  %210 = vmatpush.msra.mxu0 0.0
  %211 = vmatpush.msra.mxu0 0.0
  %212 = vmatpush.msra.mxu0 0.0
  %213 = vmatpush.msra.mxu0 0.0
  %214 = vmatpush.msra.mxu0 0.0
  %215 = vmatpush.msra.mxu0 0.0
  %216 = vmatpush.msra.mxu0 %v183
  %217 = vmatpush.msra.mxu0 %v181
  %218 = vmatpush.msra.mxu0 %v179
  %219 = vmatpush.msra.mxu0 %v177
  %220 = vmatpush.msra.mxu0 %v175
  %221 = vmatpush.msra.mxu0 %v173
  %222 = vmatpush.msra.mxu0 %v171
  %223 = vmatpush.msra.mxu0 %v169
  %224 = vmatmul.f32.gmra.mxu0 %v186
  %v225 = vpop.f32.mrf.mxu0
  %v226 = vadd.f32 0.0, %v225
  %227 = vdwg.mxu0
  %v228 = vadd.f32 %v166, %v206
  %v229 = vadd.f32 %v167, %v226
  %v230 = vxor.u32 %v228, 2147483648
  %v231 = vmul.f32 %v230, 1.442695
  %v232 = vpow.pop %v231
  %v233 = vadd.f32 %v232, 1.0
  %v234 = vrcp.pop %v233
  %v235 = vmul.f32 %v233, %v234
  %v236 = vsub.f32 1.0, %v235
  %v237 = vmul.f32 %v234, %v236
  %v238 = vadd.f32 %v234, %v237
  %vm239 = vweird.f32 %v233
  %vm240 = vweird.f32 %v234
  %vm241 = vmor %vm239, %vm240
  %v242 = vsel %vm241, %v234, %v238
  %v243 = vand.u32 2147483647, %v233
  %vm244 = vcmp.eq.f32.partialorder %v243, 8.507059e+37
  %v245 = vand.u32 %v233, 2147483648
  %v246 = vor.u32 1.1754944e-38, %v245
  %v247 = vsel %vm244, %v246, %v242
  %v248 = vmul.f32 1.0, %v247
  %v249 = vtanh.pop %v229
  %v250 = vxor.u32 %v229, 2147483648
  %v251 = vmul.f32 %v250, 1.442695
  %v252 = vpow.pop %v251
  %v253 = vadd.f32 %v252, 1.0
  %v254 = vrcp.pop %v253
  %v255 = vmul.f32 %v253, %v254
  %v256 = vsub.f32 1.0, %v255
  %v257 = vmul.f32 %v254, %v256
  %v258 = vadd.f32 %v254, %v257
  %vm259 = vweird.f32 %v253
  %vm260 = vweird.f32 %v254
  %vm261 = vmor %vm259, %vm260
  %v262 = vsel %vm261, %v254, %v258
  %v263 = vand.u32 2147483647, %v253
  %vm264 = vcmp.eq.f32.partialorder %v263, 8.507059e+37
  %v265 = vand.u32 %v253, 2147483648
  %v266 = vor.u32 1.1754944e-38, %v265
  %v267 = vsel %vm264, %v266, %v262
  %v268 = vmul.f32 1.0, %v267
  %v269 = vmul.f32 %v248, 0.0
  %v270 = vmul.f32 %v248, %v249
  %272 = vrot.lane.b32.xlu0 %v270, 64
  %v273 = vpop.permute.xlu0 %272
  %v275 = vadd.f32 %v269, %v273
  %v276 = vtanh.pop %v275
  %v277 = vmul.f32 %v268, %v276
  %279 = vrot.lane.b32.xlu0 %v277, 64
  %v280 = vpop.permute.xlu0 %279
  %v282 = vsel %vm184, %v280, 0.0
  %v283 = vld [vmem:[%s4] sm:$0xff]
  %v284 = vld [vmem:[%s4 + $0x8] sm:$0xff]
  %v285 = vld [vmem:[%s4 + $0x10] sm:$0xff]
  %v286 = vld [vmem:[%s4 + $0x18] sm:$0xff]
  %v287 = vld [vmem:[%s4 + $0x20] sm:$0xff]
  %v288 = vld [vmem:[%s4 + $0x28] sm:$0xff]
  %v289 = vld [vmem:[%s4 + $0x30] sm:$0xff]
  %v290 = vld [vmem:[%s4 + $0x38] sm:$0xff]
  %v291 = vld [vmem:[%s4 + $0x40] sm:$0xff]
  %v292 = vld [vmem:[%s4 + $0x48] sm:$0xff]
  %v293 = vld [vmem:[%s4 + $0x50] sm:$0xff]
  %v294 = vld [vmem:[%s4 + $0x58] sm:$0xff]
  %vm295 = vcmask 785408
  %v297 = vsel %vm295, %v282, 0
  %299 = vmatpush.msra.mxu0 0.0
  %300 = vmatpush.msra.mxu0 0.0
  %301 = vmatpush.msra.mxu0 0.0
  %302 = vmatpush.msra.mxu0 0.0
  %303 = vmatpush.msra.mxu0 %v294
  %304 = vmatpush.msra.mxu0 %v293
  %305 = vmatpush.msra.mxu0 %v292
  %306 = vmatpush.msra.mxu0 %v291
  %307 = vmatpush.msra.mxu0 %v290
  %308 = vmatpush.msra.mxu0 %v289
  %309 = vmatpush.msra.mxu0 %v288
  %310 = vmatpush.msra.mxu0 %v287
  %311 = vmatpush.msra.mxu0 %v286
  %312 = vmatpush.msra.mxu0 %v285
  %313 = vmatpush.msra.mxu0 %v284
  %314 = vmatpush.msra.mxu0 %v283
  %315 = vmatmul.f32.gmra.mxu0 %v297
  %v316 = vpop.f32.mrf.mxu0
  %v317 = vadd.f32 %v164, %v316
  %318 = vdwg.mxu0
  %v319 = vxor.u32 %v317, 2147483648
  %v320 = vmul.f32 %v319, 1.442695
  %v321 = vpow.pop %v320
  %v322 = vadd.f32 %v321, 1.0
  %v323 = vrcp.pop %v322
  %v324 = vmul.f32 %v322, %v323
  %v325 = vsub.f32 1.0, %v324
  %v326 = vmul.f32 %v323, %v325
  %v327 = vadd.f32 %v323, %v326
  %vm328 = vweird.f32 %v322
  %vm329 = vweird.f32 %v323
  %vm330 = vmor %vm328, %vm329
  %v331 = vsel %vm330, %v323, %v327
  %v332 = vand.u32 2147483647, %v322
  %vm333 = vcmp.eq.f32.partialorder %v332, 8.507059e+37
  %v334 = vand.u32 %v322, 2147483648
  %v335 = vor.u32 1.1754944e-38, %v334
  %v336 = vsel %vm333, %v335, %v331
  %v337 = vmul.f32 1.0, %v336
  %v338 = vtanh.pop %v317
  %v339 = vmul.f32 %v337, 0.0
  %341 = vrot.lane.b32.xlu0 %v338, 64
  %v342 = vpop.permute.xlu0 %341
  %v344 = vmul.f32 %v337, %v342
  %346 = vrot.lane.b32.xlu0 %v344, 32
  %v347 = vpop.permute.xlu0 %346
  %v349 = vadd.f32 %v339, %v347
  %v350 = vtanh.pop %v349
  %352 = vrot.lane.b32.xlu0 %v350, 64
  %v353 = vpop.permute.xlu0 %352
  %v355 = vmul.f32 %v337, %v353
  %v356 = vld [vmem:[#allocation2 + $0x10] sm:$0xff]
  %v357 = vld [vmem:[#allocation2 + $0x18] sm:$0xff]
  %v358 = vsel %vm184, %v280, 0
  %360 = vmatpush.msra.mxu0 0.0
  %361 = vmatpush.msra.mxu0 0.0
  %362 = vmatpush.msra.mxu0 0.0
  %363 = vmatpush.msra.mxu0 0.0
  %364 = vmatpush.msra.mxu0 0.0
  %365 = vmatpush.msra.mxu0 0.0
  %366 = vmatpush.msra.mxu0 0.0
  %367 = vmatpush.msra.mxu0 0.0
  %368 = vmatpush.msra.mxu0 %v182
  %369 = vmatpush.msra.mxu0 %v180
  %370 = vmatpush.msra.mxu0 %v178
  %371 = vmatpush.msra.mxu0 %v176
  %372 = vmatpush.msra.mxu0 %v174
  %373 = vmatpush.msra.mxu0 %v172
  %374 = vmatpush.msra.mxu0 %v170
  %375 = vmatpush.msra.mxu0 %v168
  %376 = vmatmul.f32.gmra.mxu0 %v358
  %v377 = vpop.f32.mrf.mxu0
  %v378 = vadd.f32 0.0, %v377
  %379 = vdwg.mxu0
  %380 = vmatpush.msra.mxu0 0.0
  %381 = vmatpush.msra.mxu0 0.0
  %382 = vmatpush.msra.mxu0 0.0
  %383 = vmatpush.msra.mxu0 0.0
  %384 = vmatpush.msra.mxu0 0.0
  %385 = vmatpush.msra.mxu0 0.0
  %386 = vmatpush.msra.mxu0 0.0
  %387 = vmatpush.msra.mxu0 0.0
  %388 = vmatpush.msra.mxu0 %v183
  %389 = vmatpush.msra.mxu0 %v181
  %390 = vmatpush.msra.mxu0 %v179
  %391 = vmatpush.msra.mxu0 %v177
  %392 = vmatpush.msra.mxu0 %v175
  %393 = vmatpush.msra.mxu0 %v173
  %394 = vmatpush.msra.mxu0 %v171
  %395 = vmatpush.msra.mxu0 %v169
  %396 = vmatmul.f32.gmra.mxu0 %v358
  %v397 = vpop.f32.mrf.mxu0
  %v398 = vadd.f32 0.0, %v397
  %399 = vdwg.mxu0
  %v400 = vadd.f32 %v356, %v378
  %v401 = vadd.f32 %v357, %v398
  %v402 = vxor.u32 %v400, 2147483648
  %v403 = vmul.f32 %v402, 1.442695
  %v404 = vpow.pop %v403
  %v405 = vadd.f32 %v404, 1.0
  %v406 = vrcp.pop %v405
  %v407 = vmul.f32 %v405, %v406
  %v408 = vsub.f32 1.0, %v407
  %v409 = vmul.f32 %v406, %v408
  %v410 = vadd.f32 %v406, %v409
  %vm411 = vweird.f32 %v405
  %vm412 = vweird.f32 %v406
  %vm413 = vmor %vm411, %vm412
  %v414 = vsel %vm413, %v406, %v410
  %v415 = vand.u32 2147483647, %v405
  %vm416 = vcmp.eq.f32.partialorder %v415, 8.507059e+37
  %v417 = vand.u32 %v405, 2147483648
  %v418 = vor.u32 1.1754944e-38, %v417
  %v419 = vsel %vm416, %v418, %v414
  %v420 = vmul.f32 1.0, %v419
  %v421 = vtanh.pop %v401
  %v422 = vxor.u32 %v401, 2147483648
  %v423 = vmul.f32 %v422, 1.442695
  %v424 = vpow.pop %v423
  %v425 = vadd.f32 %v424, 1.0
  %v426 = vrcp.pop %v425
  %v427 = vmul.f32 %v425, %v426
  %v428 = vsub.f32 1.0, %v427
  %v429 = vmul.f32 %v426, %v428
  %v430 = vadd.f32 %v426, %v429
  %vm431 = vweird.f32 %v425
  %vm432 = vweird.f32 %v426
  %vm433 = vmor %vm431, %vm432
  %v434 = vsel %vm433, %v426, %v430
  %v435 = vand.u32 2147483647, %v425
  %vm436 = vcmp.eq.f32.partialorder %v435, 8.507059e+37
  %v437 = vand.u32 %v425, 2147483648
  %v438 = vor.u32 1.1754944e-38, %v437
  %v439 = vsel %vm436, %v438, %v434
  %v440 = vmul.f32 1.0, %v439
  %v441 = vmul.f32 %v420, %v275
  %v442 = vmul.f32 %v420, %v421
  %444 = vrot.lane.b32.xlu0 %v442, 64
  %v445 = vpop.permute.xlu0 %444
  %v447 = vadd.f32 %v441, %v445
  %v448 = vtanh.pop %v447
  %v449 = vmul.f32 %v440, %v448
  %451 = vrot.lane.b32.xlu0 %v449, 64
  %v452 = vpop.permute.xlu0 %451
  %455 = vrot.lane.b32.xlu0 %v355, 96
  %v456 = vpop.permute.xlu0 %455
  %v458 = vsel %vm184, %v452, %v456
  %v460 = vsel %vm295, %v458, 0
  %462 = vmatpush.msra.mxu0 0.0
  %463 = vmatpush.msra.mxu0 0.0
  %464 = vmatpush.msra.mxu0 0.0
  %465 = vmatpush.msra.mxu0 0.0
  %466 = vmatpush.msra.mxu0 %v294
  %467 = vmatpush.msra.mxu0 %v293
  %468 = vmatpush.msra.mxu0 %v292
  %469 = vmatpush.msra.mxu0 %v291
  %470 = vmatpush.msra.mxu0 %v290
  %471 = vmatpush.msra.mxu0 %v289
  %472 = vmatpush.msra.mxu0 %v288
  %473 = vmatpush.msra.mxu0 %v287
  %474 = vmatpush.msra.mxu0 %v286
  %475 = vmatpush.msra.mxu0 %v285
  %476 = vmatpush.msra.mxu0 %v284
  %477 = vmatpush.msra.mxu0 %v283
  %478 = vmatmul.f32.gmra.mxu0 %v460
  %v479 = vpop.f32.mrf.mxu0
  %v480 = vadd.f32 %v164, %v479
  %481 = vdwg.mxu0
  %v482 = vxor.u32 %v480, 2147483648
  %v483 = vmul.f32 %v482, 1.442695
  %v484 = vpow.pop %v483
  %v485 = vadd.f32 %v484, 1.0
  %v486 = vrcp.pop %v485
  %v487 = vmul.f32 %v485, %v486
  %v488 = vsub.f32 1.0, %v487
  %v489 = vmul.f32 %v486, %v488
  %v490 = vadd.f32 %v486, %v489
  %vm491 = vweird.f32 %v485
  %vm492 = vweird.f32 %v486
  %vm493 = vmor %vm491, %vm492
  %v494 = vsel %vm493, %v486, %v490
  %v495 = vand.u32 2147483647, %v485
  %vm496 = vcmp.eq.f32.partialorder %v495, 8.507059e+37
  %v497 = vand.u32 %v485, 2147483648
  %v498 = vor.u32 1.1754944e-38, %v497
  %v499 = vsel %vm496, %v498, %v494
  %v500 = vmul.f32 1.0, %v499
  %v501 = vtanh.pop %v480
  %v502 = vmul.f32 %v500, %v349
  %504 = vrot.lane.b32.xlu0 %v501, 64
  %v505 = vpop.permute.xlu0 %504
  %v507 = vmul.f32 %v500, %v505
  %509 = vrot.lane.b32.xlu0 %v507, 32
  %v510 = vpop.permute.xlu0 %509
  %v512 = vadd.f32 %v502, %v510
  %v513 = vtanh.pop %v512
  %515 = vrot.lane.b32.xlu0 %v513, 64
  %v516 = vpop.permute.xlu0 %515
  %v518 = vmul.f32 %v500, %v516
  %v519 = vld [vmem:[#allocation2 + $0x20] sm:$0xff]
  %v520 = vld [vmem:[#allocation2 + $0x28] sm:$0xff]
  %v521 = vsel %vm184, %v452, 0
  %523 = vmatpush.msra.mxu0 0.0
  %524 = vmatpush.msra.mxu0 0.0
  %525 = vmatpush.msra.mxu0 0.0
  %526 = vmatpush.msra.mxu0 0.0
  %527 = vmatpush.msra.mxu0 0.0
  %528 = vmatpush.msra.mxu0 0.0
  %529 = vmatpush.msra.mxu0 0.0
  %530 = vmatpush.msra.mxu0 0.0
  %531 = vmatpush.msra.mxu0 %v182
  %532 = vmatpush.msra.mxu0 %v180
  %533 = vmatpush.msra.mxu0 %v178
  %534 = vmatpush.msra.mxu0 %v176
  %535 = vmatpush.msra.mxu0 %v174
  %536 = vmatpush.msra.mxu0 %v172
  %537 = vmatpush.msra.mxu0 %v170
  %538 = vmatpush.msra.mxu0 %v168
  %539 = vmatmul.f32.gmra.mxu0 %v521
  %v540 = vpop.f32.mrf.mxu0
  %v541 = vadd.f32 0.0, %v540
  %542 = vdwg.mxu0
  %543 = vmatpush.msra.mxu0 0.0
  %544 = vmatpush.msra.mxu0 0.0
  %545 = vmatpush.msra.mxu0 0.0
  %546 = vmatpush.msra.mxu0 0.0
  %547 = vmatpush.msra.mxu0 0.0
  %548 = vmatpush.msra.mxu0 0.0
  %549 = vmatpush.msra.mxu0 0.0
  %550 = vmatpush.msra.mxu0 0.0
  %551 = vmatpush.msra.mxu0 %v183
  %552 = vmatpush.msra.mxu0 %v181
  %553 = vmatpush.msra.mxu0 %v179
  %554 = vmatpush.msra.mxu0 %v177
  %555 = vmatpush.msra.mxu0 %v175
  %556 = vmatpush.msra.mxu0 %v173
  %557 = vmatpush.msra.mxu0 %v171
  %558 = vmatpush.msra.mxu0 %v169
  %559 = vmatmul.f32.gmra.mxu0 %v521
  %v560 = vpop.f32.mrf.mxu0
  %v561 = vadd.f32 0.0, %v560
  %562 = vdwg.mxu0
  %v563 = vadd.f32 %v519, %v541
  %v564 = vadd.f32 %v520, %v561
  %v565 = vxor.u32 %v563, 2147483648
  %v566 = vmul.f32 %v565, 1.442695
  %v567 = vpow.pop %v566
  %v568 = vadd.f32 %v567, 1.0
  %v569 = vrcp.pop %v568
  %v570 = vmul.f32 %v568, %v569
  %v571 = vsub.f32 1.0, %v570
  %v572 = vmul.f32 %v569, %v571
  %v573 = vadd.f32 %v569, %v572
  %vm574 = vweird.f32 %v568
  %vm575 = vweird.f32 %v569
  %vm576 = vmor %vm574, %vm575
  %v577 = vsel %vm576, %v569, %v573
  %v578 = vand.u32 2147483647, %v568
  %vm579 = vcmp.eq.f32.partialorder %v578, 8.507059e+37
  %v580 = vand.u32 %v568, 2147483648
  %v581 = vor.u32 1.1754944e-38, %v580
  %v582 = vsel %vm579, %v581, %v577
  %v583 = vmul.f32 1.0, %v582
  %v584 = vtanh.pop %v564
  %v585 = vxor.u32 %v564, 2147483648
  %v586 = vmul.f32 %v585, 1.442695
  %v587 = vpow.pop %v586
  %v588 = vadd.f32 %v587, 1.0
  %v589 = vrcp.pop %v588
  %v590 = vmul.f32 %v588, %v589
  %v591 = vsub.f32 1.0, %v590
  %v592 = vmul.f32 %v589, %v591
  %v593 = vadd.f32 %v589, %v592
  %vm594 = vweird.f32 %v588
  %vm595 = vweird.f32 %v589
  %vm596 = vmor %vm594, %vm595
  %v597 = vsel %vm596, %v589, %v593
  %v598 = vand.u32 2147483647, %v588
  %vm599 = vcmp.eq.f32.partialorder %v598, 8.507059e+37
  %v600 = vand.u32 %v588, 2147483648
  %v601 = vor.u32 1.1754944e-38, %v600
  %v602 = vsel %vm599, %v601, %v597
  %v603 = vmul.f32 1.0, %v602
  %v604 = vmul.f32 %v583, %v447
  %v605 = vmul.f32 %v583, %v584
  %607 = vrot.lane.b32.xlu0 %v605, 64
  %v608 = vpop.permute.xlu0 %607
  %v610 = vadd.f32 %v604, %v608
  %v611 = vtanh.pop %v610
  %v612 = vmul.f32 %v603, %v611
  %614 = vrot.lane.b32.xlu0 %v612, 64
  %v615 = vpop.permute.xlu0 %614
  %618 = vrot.lane.b32.xlu0 %v518, 96
  %v619 = vpop.permute.xlu0 %618
  %v621 = vsel %vm184, %v615, %v619
  %v623 = vsel %vm295, %v621, 0
  %625 = vmatpush.msra.mxu0 0.0
  %626 = vmatpush.msra.mxu0 0.0
  %627 = vmatpush.msra.mxu0 0.0
  %628 = vmatpush.msra.mxu0 0.0
  %629 = vmatpush.msra.mxu0 %v294
  %630 = vmatpush.msra.mxu0 %v293
  %631 = vmatpush.msra.mxu0 %v292
  %632 = vmatpush.msra.mxu0 %v291
  %633 = vmatpush.msra.mxu0 %v290
  %634 = vmatpush.msra.mxu0 %v289
  %635 = vmatpush.msra.mxu0 %v288
  %636 = vmatpush.msra.mxu0 %v287
  %637 = vmatpush.msra.mxu0 %v286
  %638 = vmatpush.msra.mxu0 %v285
  %639 = vmatpush.msra.mxu0 %v284
  %640 = vmatpush.msra.mxu0 %v283
  %641 = vmatmul.f32.gmra.mxu0 %v623
  %v642 = vpop.f32.mrf.mxu0
  %v643 = vadd.f32 %v164, %v642
  %644 = vdwg.mxu0
  %v645 = vxor.u32 %v643, 2147483648
  %v646 = vmul.f32 %v645, 1.442695
  %v647 = vpow.pop %v646
  %v648 = vadd.f32 %v647, 1.0
  %v649 = vrcp.pop %v648
  %v650 = vmul.f32 %v648, %v649
  %v651 = vsub.f32 1.0, %v650
  %v652 = vmul.f32 %v649, %v651
  %v653 = vadd.f32 %v649, %v652
  %vm654 = vweird.f32 %v648
  %vm655 = vweird.f32 %v649
  %vm656 = vmor %vm654, %vm655
  %v657 = vsel %vm656, %v649, %v653
  %v658 = vand.u32 2147483647, %v648
  %vm659 = vcmp.eq.f32.partialorder %v658, 8.507059e+37
  %v660 = vand.u32 %v648, 2147483648
  %v661 = vor.u32 1.1754944e-38, %v660
  %v662 = vsel %vm659, %v661, %v657
  %v663 = vmul.f32 1.0, %v662
  %v664 = vtanh.pop %v643
  %v665 = vmul.f32 %v663, %v512
  %667 = vrot.lane.b32.xlu0 %v664, 64
  %v668 = vpop.permute.xlu0 %667
  %v670 = vmul.f32 %v663, %v668
  %672 = vrot.lane.b32.xlu0 %v670, 32
  %v673 = vpop.permute.xlu0 %672
  %v675 = vadd.f32 %v665, %v673
  %v676 = vtanh.pop %v675
  %678 = vrot.lane.b32.xlu0 %v676, 64
  %v679 = vpop.permute.xlu0 %678
  %v681 = vmul.f32 %v663, %v679
  %v682 = vld [vmem:[#allocation2 + $0x30] sm:$0xff]
  %v683 = vld [vmem:[#allocation2 + $0x38] sm:$0xff]
  %v684 = vsel %vm184, %v615, 0
  %686 = vmatpush.msra.mxu0 0.0
  %687 = vmatpush.msra.mxu0 0.0
  %688 = vmatpush.msra.mxu0 0.0
  %689 = vmatpush.msra.mxu0 0.0
  %690 = vmatpush.msra.mxu0 0.0
  %691 = vmatpush.msra.mxu0 0.0
  %692 = vmatpush.msra.mxu0 0.0
  %693 = vmatpush.msra.mxu0 0.0
  %694 = vmatpush.msra.mxu0 %v182
  %695 = vmatpush.msra.mxu0 %v180
  %696 = vmatpush.msra.mxu0 %v178
  %697 = vmatpush.msra.mxu0 %v176
  %698 = vmatpush.msra.mxu0 %v174
  %699 = vmatpush.msra.mxu0 %v172
  %700 = vmatpush.msra.mxu0 %v170
  %701 = vmatpush.msra.mxu0 %v168
  %702 = vmatmul.f32.gmra.mxu0 %v684
  %v703 = vpop.f32.mrf.mxu0
  %v704 = vadd.f32 0.0, %v703
  %705 = vdwg.mxu0
  %706 = vmatpush.msra.mxu0 0.0
  %707 = vmatpush.msra.mxu0 0.0
  %708 = vmatpush.msra.mxu0 0.0
  %709 = vmatpush.msra.mxu0 0.0
  %710 = vmatpush.msra.mxu0 0.0
  %711 = vmatpush.msra.mxu0 0.0
  %712 = vmatpush.msra.mxu0 0.0
  %713 = vmatpush.msra.mxu0 0.0
  %714 = vmatpush.msra.mxu0 %v183
  %715 = vmatpush.msra.mxu0 %v181
  %716 = vmatpush.msra.mxu0 %v179
  %717 = vmatpush.msra.mxu0 %v177
  %718 = vmatpush.msra.mxu0 %v175
  %719 = vmatpush.msra.mxu0 %v173
  %720 = vmatpush.msra.mxu0 %v171
  %721 = vmatpush.msra.mxu0 %v169
  %722 = vmatmul.f32.gmra.mxu0 %v684
  %v723 = vpop.f32.mrf.mxu0
  %v724 = vadd.f32 0.0, %v723
  %725 = vdwg.mxu0
  %v726 = vadd.f32 %v682, %v704
  %v727 = vadd.f32 %v683, %v724
  %v728 = vxor.u32 %v726, 2147483648
  %v729 = vmul.f32 %v728, 1.442695
  %v730 = vpow.pop %v729
  %v731 = vadd.f32 %v730, 1.0
  %v732 = vrcp.pop %v731
  %v733 = vmul.f32 %v731, %v732
  %v734 = vsub.f32 1.0, %v733
  %v735 = vmul.f32 %v732, %v734
  %v736 = vadd.f32 %v732, %v735
  %vm737 = vweird.f32 %v731
  %vm738 = vweird.f32 %v732
  %vm739 = vmor %vm737, %vm738
  %v740 = vsel %vm739, %v732, %v736
  %v741 = vand.u32 2147483647, %v731
  %vm742 = vcmp.eq.f32.partialorder %v741, 8.507059e+37
  %v743 = vand.u32 %v731, 2147483648
  %v744 = vor.u32 1.1754944e-38, %v743
  %v745 = vsel %vm742, %v744, %v740
  %v746 = vmul.f32 1.0, %v745
  %v747 = vtanh.pop %v727
  %v748 = vxor.u32 %v727, 2147483648
  %v749 = vmul.f32 %v748, 1.442695
  %v750 = vpow.pop %v749
  %v751 = vadd.f32 %v750, 1.0
  %v752 = vrcp.pop %v751
  %v753 = vmul.f32 %v751, %v752
  %v754 = vsub.f32 1.0, %v753
  %v755 = vmul.f32 %v752, %v754
  %v756 = vadd.f32 %v752, %v755
  %vm757 = vweird.f32 %v751
  %vm758 = vweird.f32 %v752
  %vm759 = vmor %vm757, %vm758
  %v760 = vsel %vm759, %v752, %v756
  %v761 = vand.u32 2147483647, %v751
  %vm762 = vcmp.eq.f32.partialorder %v761, 8.507059e+37
  %v763 = vand.u32 %v751, 2147483648
  %v764 = vor.u32 1.1754944e-38, %v763
  %v765 = vsel %vm762, %v764, %v760
  %v766 = vmul.f32 1.0, %v765
  %v767 = vmul.f32 %v746, %v610
  %v768 = vmul.f32 %v746, %v747
  %770 = vrot.lane.b32.xlu0 %v768, 64
  %v771 = vpop.permute.xlu0 %770
  %v773 = vadd.f32 %v767, %v771
  %v774 = vtanh.pop %v773
  %v775 = vmul.f32 %v766, %v774
  %777 = vrot.lane.b32.xlu0 %v775, 64
  %v778 = vpop.permute.xlu0 %777
  %781 = vrot.lane.b32.xlu0 %v681, 96
  %v782 = vpop.permute.xlu0 %781
  %v784 = vsel %vm184, %v778, %v782
  %v786 = vsel %vm295, %v784, 0
  %788 = vmatpush.msra.mxu0 0.0
  %789 = vmatpush.msra.mxu0 0.0
  %790 = vmatpush.msra.mxu0 0.0
  %791 = vmatpush.msra.mxu0 0.0
  %792 = vmatpush.msra.mxu0 %v294
  %793 = vmatpush.msra.mxu0 %v293
  %794 = vmatpush.msra.mxu0 %v292
  %795 = vmatpush.msra.mxu0 %v291
  %796 = vmatpush.msra.mxu0 %v290
  %797 = vmatpush.msra.mxu0 %v289
  %798 = vmatpush.msra.mxu0 %v288
  %799 = vmatpush.msra.mxu0 %v287
  %800 = vmatpush.msra.mxu0 %v286
  %801 = vmatpush.msra.mxu0 %v285
  %802 = vmatpush.msra.mxu0 %v284
  %803 = vmatpush.msra.mxu0 %v283
  %804 = vmatmul.f32.gmra.mxu0 %v786
  %v805 = vpop.f32.mrf.mxu0
  %v806 = vadd.f32 %v164, %v805
  %807 = vdwg.mxu0
  %v808 = vxor.u32 %v806, 2147483648
  %v809 = vmul.f32 %v808, 1.442695
  %v810 = vpow.pop %v809
  %v811 = vadd.f32 %v810, 1.0
  %v812 = vrcp.pop %v811
  %v813 = vmul.f32 %v811, %v812
  %v814 = vsub.f32 1.0, %v813
  %v815 = vmul.f32 %v812, %v814
  %v816 = vadd.f32 %v812, %v815
  %vm817 = vweird.f32 %v811
  %vm818 = vweird.f32 %v812
  %vm819 = vmor %vm817, %vm818
  %v820 = vsel %vm819, %v812, %v816
  %v821 = vand.u32 2147483647, %v811
  %vm822 = vcmp.eq.f32.partialorder %v821, 8.507059e+37
  %v823 = vand.u32 %v811, 2147483648
  %v824 = vor.u32 1.1754944e-38, %v823
  %v825 = vsel %vm822, %v824, %v820
  %v826 = vmul.f32 1.0, %v825
  %v827 = vtanh.pop %v806
  %v828 = vmul.f32 %v826, %v675
  %830 = vrot.lane.b32.xlu0 %v827, 64
  %v831 = vpop.permute.xlu0 %830
  %v833 = vmul.f32 %v826, %v831
  %835 = vrot.lane.b32.xlu0 %v833, 32
  %v836 = vpop.permute.xlu0 %835
  %v838 = vadd.f32 %v828, %v836
  %v839 = vtanh.pop %v838
  %841 = vrot.lane.b32.xlu0 %v839, 64
  %v842 = vpop.permute.xlu0 %841
  %v844 = vmul.f32 %v826, %v842
  %v845 = vld [vmem:[#allocation2 + $0x40] sm:$0xff]
  %v846 = vld [vmem:[#allocation2 + $0x48] sm:$0xff]
  %v847 = vsel %vm184, %v778, 0
  %849 = vmatpush.msra.mxu0 0.0
  %850 = vmatpush.msra.mxu0 0.0
  %851 = vmatpush.msra.mxu0 0.0
  %852 = vmatpush.msra.mxu0 0.0
  %853 = vmatpush.msra.mxu0 0.0
  %854 = vmatpush.msra.mxu0 0.0
  %855 = vmatpush.msra.mxu0 0.0
  %856 = vmatpush.msra.mxu0 0.0
  %857 = vmatpush.msra.mxu0 %v182
  %858 = vmatpush.msra.mxu0 %v180
  %859 = vmatpush.msra.mxu0 %v178
  %860 = vmatpush.msra.mxu0 %v176
  %861 = vmatpush.msra.mxu0 %v174
  %862 = vmatpush.msra.mxu0 %v172
  %863 = vmatpush.msra.mxu0 %v170
  %864 = vmatpush.msra.mxu0 %v168
  %865 = vmatmul.f32.gmra.mxu0 %v847
  %v866 = vpop.f32.mrf.mxu0
  %v867 = vadd.f32 0.0, %v866
  %868 = vdwg.mxu0
  %869 = vmatpush.msra.mxu0 0.0
  %870 = vmatpush.msra.mxu0 0.0
  %871 = vmatpush.msra.mxu0 0.0
  %872 = vmatpush.msra.mxu0 0.0
  %873 = vmatpush.msra.mxu0 0.0
  %874 = vmatpush.msra.mxu0 0.0
  %875 = vmatpush.msra.mxu0 0.0
  %876 = vmatpush.msra.mxu0 0.0
  %877 = vmatpush.msra.mxu0 %v183
  %878 = vmatpush.msra.mxu0 %v181
  %879 = vmatpush.msra.mxu0 %v179
  %880 = vmatpush.msra.mxu0 %v177
  %881 = vmatpush.msra.mxu0 %v175
  %882 = vmatpush.msra.mxu0 %v173
  %883 = vmatpush.msra.mxu0 %v171
  %884 = vmatpush.msra.mxu0 %v169
  %885 = vmatmul.f32.gmra.mxu0 %v847
  %v886 = vpop.f32.mrf.mxu0
  %v887 = vadd.f32 0.0, %v886
  %888 = vdwg.mxu0
  %v889 = vadd.f32 %v845, %v867
  %v890 = vadd.f32 %v846, %v887
  %v891 = vxor.u32 %v889, 2147483648
  %v892 = vmul.f32 %v891, 1.442695
  %v893 = vpow.pop %v892
  %v894 = vadd.f32 %v893, 1.0
  %v895 = vrcp.pop %v894
  %v896 = vmul.f32 %v894, %v895
  %v897 = vsub.f32 1.0, %v896
  %v898 = vmul.f32 %v895, %v897
  %v899 = vadd.f32 %v895, %v898
  %vm900 = vweird.f32 %v894
  %vm901 = vweird.f32 %v895
  %vm902 = vmor %vm900, %vm901
  %v903 = vsel %vm902, %v895, %v899
  %v904 = vand.u32 2147483647, %v894
  %vm905 = vcmp.eq.f32.partialorder %v904, 8.507059e+37
  %v906 = vand.u32 %v894, 2147483648
  %v907 = vor.u32 1.1754944e-38, %v906
  %v908 = vsel %vm905, %v907, %v903
  %v909 = vmul.f32 1.0, %v908
  %v910 = vtanh.pop %v890
  %v911 = vxor.u32 %v890, 2147483648
  %v912 = vmul.f32 %v911, 1.442695
  %v913 = vpow.pop %v912
  %v914 = vadd.f32 %v913, 1.0
  %v915 = vrcp.pop %v914
  %v916 = vmul.f32 %v914, %v915
  %v917 = vsub.f32 1.0, %v916
  %v918 = vmul.f32 %v915, %v917
  %v919 = vadd.f32 %v915, %v918
  %vm920 = vweird.f32 %v914
  %vm921 = vweird.f32 %v915
  %vm922 = vmor %vm920, %vm921
  %v923 = vsel %vm922, %v915, %v919
  %v924 = vand.u32 2147483647, %v914
  %vm925 = vcmp.eq.f32.partialorder %v924, 8.507059e+37
  %v926 = vand.u32 %v914, 2147483648
  %v927 = vor.u32 1.1754944e-38, %v926
  %v928 = vsel %vm925, %v927, %v923
  %v929 = vmul.f32 1.0, %v928
  %v930 = vmul.f32 %v909, %v773
  %v931 = vmul.f32 %v909, %v910
  %933 = vrot.lane.b32.xlu0 %v931, 64
  %v934 = vpop.permute.xlu0 %933
  %v936 = vadd.f32 %v930, %v934
  %v937 = vtanh.pop %v936
  %v938 = vmul.f32 %v929, %v937
  %940 = vrot.lane.b32.xlu0 %v938, 64
  %v941 = vpop.permute.xlu0 %940
  %944 = vrot.lane.b32.xlu0 %v844, 96
  %v945 = vpop.permute.xlu0 %944
  %v947 = vsel %vm184, %v941, %v945
  %v949 = vsel %vm295, %v947, 0
  %951 = vmatpush.msra.mxu0 0.0
  %952 = vmatpush.msra.mxu0 0.0
  %953 = vmatpush.msra.mxu0 0.0
  %954 = vmatpush.msra.mxu0 0.0
  %955 = vmatpush.msra.mxu0 %v294
  %956 = vmatpush.msra.mxu0 %v293
  %957 = vmatpush.msra.mxu0 %v292
  %958 = vmatpush.msra.mxu0 %v291
  %959 = vmatpush.msra.mxu0 %v290
  %960 = vmatpush.msra.mxu0 %v289
  %961 = vmatpush.msra.mxu0 %v288
  %962 = vmatpush.msra.mxu0 %v287
  %963 = vmatpush.msra.mxu0 %v286
  %964 = vmatpush.msra.mxu0 %v285
  %965 = vmatpush.msra.mxu0 %v284
  %966 = vmatpush.msra.mxu0 %v283
  %967 = vmatmul.f32.gmra.mxu0 %v949
  %v968 = vpop.f32.mrf.mxu0
  %v969 = vadd.f32 %v164, %v968
  %970 = vdwg.mxu0
  %v971 = vxor.u32 %v969, 2147483648
  %v972 = vmul.f32 %v971, 1.442695
  %v973 = vpow.pop %v972
  %v974 = vadd.f32 %v973, 1.0
  %v975 = vrcp.pop %v974
  %v976 = vmul.f32 %v974, %v975
  %v977 = vsub.f32 1.0, %v976
  %v978 = vmul.f32 %v975, %v977
  %v979 = vadd.f32 %v975, %v978
  %vm980 = vweird.f32 %v974
  %vm981 = vweird.f32 %v975
  %vm982 = vmor %vm980, %vm981
  %v983 = vsel %vm982, %v975, %v979
  %v984 = vand.u32 2147483647, %v974
  %vm985 = vcmp.eq.f32.partialorder %v984, 8.507059e+37
  %v986 = vand.u32 %v974, 2147483648
  %v987 = vor.u32 1.1754944e-38, %v986
  %v988 = vsel %vm985, %v987, %v983
  %v989 = vmul.f32 1.0, %v988
  %v990 = vtanh.pop %v969
  %v991 = vmul.f32 %v989, %v838
  %993 = vrot.lane.b32.xlu0 %v990, 64
  %v994 = vpop.permute.xlu0 %993
  %v996 = vmul.f32 %v989, %v994
  %998 = vrot.lane.b32.xlu0 %v996, 32
  %v999 = vpop.permute.xlu0 %998
  %v1001 = vadd.f32 %v991, %v999
  %v1002 = vtanh.pop %v1001
  %1004 = vrot.lane.b32.xlu0 %v1002, 64
  %v1005 = vpop.permute.xlu0 %1004
  %v1007 = vmul.f32 %v989, %v1005
  %v1008 = vld [vmem:[#allocation2 + $0x50] sm:$0xff]
  %v1009 = vld [vmem:[#allocation2 + $0x58] sm:$0xff]
  %v1010 = vsel %vm184, %v941, 0
  %1012 = vmatpush.msra.mxu0 0.0
  %1013 = vmatpush.msra.mxu0 0.0
  %1014 = vmatpush.msra.mxu0 0.0
  %1015 = vmatpush.msra.mxu0 0.0
  %1016 = vmatpush.msra.mxu0 0.0
  %1017 = vmatpush.msra.mxu0 0.0
  %1018 = vmatpush.msra.mxu0 0.0
  %1019 = vmatpush.msra.mxu0 0.0
  %1020 = vmatpush.msra.mxu0 %v182
  %1021 = vmatpush.msra.mxu0 %v180
  %1022 = vmatpush.msra.mxu0 %v178
  %1023 = vmatpush.msra.mxu0 %v176
  %1024 = vmatpush.msra.mxu0 %v174
  %1025 = vmatpush.msra.mxu0 %v172
  %1026 = vmatpush.msra.mxu0 %v170
  %1027 = vmatpush.msra.mxu0 %v168
  %1028 = vmatmul.f32.gmra.mxu0 %v1010
  %v1029 = vpop.f32.mrf.mxu0
  %v1030 = vadd.f32 0.0, %v1029
  %1031 = vdwg.mxu0
  %1032 = vmatpush.msra.mxu0 0.0
  %1033 = vmatpush.msra.mxu0 0.0
  %1034 = vmatpush.msra.mxu0 0.0
  %1035 = vmatpush.msra.mxu0 0.0
  %1036 = vmatpush.msra.mxu0 0.0
  %1037 = vmatpush.msra.mxu0 0.0
  %1038 = vmatpush.msra.mxu0 0.0
  %1039 = vmatpush.msra.mxu0 0.0
  %1040 = vmatpush.msra.mxu0 %v183
  %1041 = vmatpush.msra.mxu0 %v181
  %1042 = vmatpush.msra.mxu0 %v179
  %1043 = vmatpush.msra.mxu0 %v177
  %1044 = vmatpush.msra.mxu0 %v175
  %1045 = vmatpush.msra.mxu0 %v173
  %1046 = vmatpush.msra.mxu0 %v171
  %1047 = vmatpush.msra.mxu0 %v169
  %1048 = vmatmul.f32.gmra.mxu0 %v1010
  %v1049 = vpop.f32.mrf.mxu0
  %v1050 = vadd.f32 0.0, %v1049
  %1051 = vdwg.mxu0
  %v1052 = vadd.f32 %v1008, %v1030
  %v1053 = vadd.f32 %v1009, %v1050
  %v1054 = vxor.u32 %v1052, 2147483648
  %v1055 = vmul.f32 %v1054, 1.442695
  %v1056 = vpow.pop %v1055
  %v1057 = vadd.f32 %v1056, 1.0
  %v1058 = vrcp.pop %v1057
  %v1059 = vmul.f32 %v1057, %v1058
  %v1060 = vsub.f32 1.0, %v1059
  %v1061 = vmul.f32 %v1058, %v1060
  %v1062 = vadd.f32 %v1058, %v1061
  %vm1063 = vweird.f32 %v1057
  %vm1064 = vweird.f32 %v1058
  %vm1065 = vmor %vm1063, %vm1064
  %v1066 = vsel %vm1065, %v1058, %v1062
  %v1067 = vand.u32 2147483647, %v1057
  %vm1068 = vcmp.eq.f32.partialorder %v1067, 8.507059e+37
  %v1069 = vand.u32 %v1057, 2147483648
  %v1070 = vor.u32 1.1754944e-38, %v1069
  %v1071 = vsel %vm1068, %v1070, %v1066
  %v1072 = vmul.f32 1.0, %v1071
  %v1073 = vtanh.pop %v1053
  %v1074 = vxor.u32 %v1053, 2147483648
  %v1075 = vmul.f32 %v1074, 1.442695
  %v1076 = vpow.pop %v1075
  %v1077 = vadd.f32 %v1076, 1.0
  %v1078 = vrcp.pop %v1077
  %v1079 = vmul.f32 %v1077, %v1078
  %v1080 = vsub.f32 1.0, %v1079
  %v1081 = vmul.f32 %v1078, %v1080
  %v1082 = vadd.f32 %v1078, %v1081
  %vm1083 = vweird.f32 %v1077
  %vm1084 = vweird.f32 %v1078
  %vm1085 = vmor %vm1083, %vm1084
  %v1086 = vsel %vm1085, %v1078, %v1082
  %v1087 = vand.u32 2147483647, %v1077
  %vm1088 = vcmp.eq.f32.partialorder %v1087, 8.507059e+37
  %v1089 = vand.u32 %v1077, 2147483648
  %v1090 = vor.u32 1.1754944e-38, %v1089
  %v1091 = vsel %vm1088, %v1090, %v1086
  %v1092 = vmul.f32 1.0, %v1091
  %v1093 = vmul.f32 %v1072, %v936
  %v1094 = vmul.f32 %v1072, %v1073
  %1096 = vrot.lane.b32.xlu0 %v1094, 64
  %v1097 = vpop.permute.xlu0 %1096
  %v1099 = vadd.f32 %v1093, %v1097
  %v1100 = vtanh.pop %v1099
  %v1101 = vmul.f32 %v1092, %v1100
  %1103 = vrot.lane.b32.xlu0 %v1101, 64
  %v1104 = vpop.permute.xlu0 %1103
  %1107 = vrot.lane.b32.xlu0 %v1007, 96
  %v1108 = vpop.permute.xlu0 %1107
  %v1110 = vsel %vm184, %v1104, %v1108
  %v1112 = vsel %vm295, %v1110, 0
  %1114 = vmatpush.msra.mxu0 0.0
  %1115 = vmatpush.msra.mxu0 0.0
  %1116 = vmatpush.msra.mxu0 0.0
  %1117 = vmatpush.msra.mxu0 0.0
  %1118 = vmatpush.msra.mxu0 %v294
  %1119 = vmatpush.msra.mxu0 %v293
  %1120 = vmatpush.msra.mxu0 %v292
  %1121 = vmatpush.msra.mxu0 %v291
  %1122 = vmatpush.msra.mxu0 %v290
  %1123 = vmatpush.msra.mxu0 %v289
  %1124 = vmatpush.msra.mxu0 %v288
  %1125 = vmatpush.msra.mxu0 %v287
  %1126 = vmatpush.msra.mxu0 %v286
  %1127 = vmatpush.msra.mxu0 %v285
  %1128 = vmatpush.msra.mxu0 %v284
  %1129 = vmatpush.msra.mxu0 %v283
  %1130 = vmatmul.f32.gmra.mxu0 %v1112
  %v1131 = vpop.f32.mrf.mxu0
  %v1132 = vadd.f32 %v164, %v1131
  %1133 = vdwg.mxu0
  %v1134 = vxor.u32 %v1132, 2147483648
  %v1135 = vmul.f32 %v1134, 1.442695
  %v1136 = vpow.pop %v1135
  %v1137 = vadd.f32 %v1136, 1.0
  %v1138 = vrcp.pop %v1137
  %v1139 = vmul.f32 %v1137, %v1138
  %v1140 = vsub.f32 1.0, %v1139
  %v1141 = vmul.f32 %v1138, %v1140
  %v1142 = vadd.f32 %v1138, %v1141
  %vm1143 = vweird.f32 %v1137
  %vm1144 = vweird.f32 %v1138
  %vm1145 = vmor %vm1143, %vm1144
  %v1146 = vsel %vm1145, %v1138, %v1142
  %v1147 = vand.u32 2147483647, %v1137
  %vm1148 = vcmp.eq.f32.partialorder %v1147, 8.507059e+37
  %v1149 = vand.u32 %v1137, 2147483648
  %v1150 = vor.u32 1.1754944e-38, %v1149
  %v1151 = vsel %vm1148, %v1150, %v1146
  %v1152 = vmul.f32 1.0, %v1151
  %v1153 = vtanh.pop %v1132
  %v1154 = vmul.f32 %v1152, %v1001
  %1156 = vrot.lane.b32.xlu0 %v1153, 64
  %v1157 = vpop.permute.xlu0 %1156
  %v1159 = vmul.f32 %v1152, %v1157
  %1161 = vrot.lane.b32.xlu0 %v1159, 32
  %v1162 = vpop.permute.xlu0 %1161
  %v1164 = vadd.f32 %v1154, %v1162
  %v1165 = vtanh.pop %v1164
  %1167 = vrot.lane.b32.xlu0 %v1165, 64
  %v1168 = vpop.permute.xlu0 %1167
  %v1170 = vmul.f32 %v1152, %v1168
  %v1171 = vld [vmem:[#allocation2 + $0x60] sm:$0xff]
  %v1172 = vld [vmem:[#allocation2 + $0x68] sm:$0xff]
  %v1173 = vsel %vm184, %v1104, 0
  %1175 = vmatpush.msra.mxu0 0.0
  %1176 = vmatpush.msra.mxu0 0.0
  %1177 = vmatpush.msra.mxu0 0.0
  %1178 = vmatpush.msra.mxu0 0.0
  %1179 = vmatpush.msra.mxu0 0.0
  %1180 = vmatpush.msra.mxu0 0.0
  %1181 = vmatpush.msra.mxu0 0.0
  %1182 = vmatpush.msra.mxu0 0.0
  %1183 = vmatpush.msra.mxu0 %v182
  %1184 = vmatpush.msra.mxu0 %v180
  %1185 = vmatpush.msra.mxu0 %v178
  %1186 = vmatpush.msra.mxu0 %v176
  %1187 = vmatpush.msra.mxu0 %v174
  %1188 = vmatpush.msra.mxu0 %v172
  %1189 = vmatpush.msra.mxu0 %v170
  %1190 = vmatpush.msra.mxu0 %v168
  %1191 = vmatmul.f32.gmra.mxu0 %v1173
  %v1192 = vpop.f32.mrf.mxu0
  %v1193 = vadd.f32 0.0, %v1192
  %1194 = vdwg.mxu0
  %1195 = vmatpush.msra.mxu0 0.0
  %1196 = vmatpush.msra.mxu0 0.0
  %1197 = vmatpush.msra.mxu0 0.0
  %1198 = vmatpush.msra.mxu0 0.0
  %1199 = vmatpush.msra.mxu0 0.0
  %1200 = vmatpush.msra.mxu0 0.0
  %1201 = vmatpush.msra.mxu0 0.0
  %1202 = vmatpush.msra.mxu0 0.0
  %1203 = vmatpush.msra.mxu0 %v183
  %1204 = vmatpush.msra.mxu0 %v181
  %1205 = vmatpush.msra.mxu0 %v179
  %1206 = vmatpush.msra.mxu0 %v177
  %1207 = vmatpush.msra.mxu0 %v175
  %1208 = vmatpush.msra.mxu0 %v173
  %1209 = vmatpush.msra.mxu0 %v171
  %1210 = vmatpush.msra.mxu0 %v169
  %1211 = vmatmul.f32.gmra.mxu0 %v1173
  %v1212 = vpop.f32.mrf.mxu0
  %v1213 = vadd.f32 0.0, %v1212
  %1214 = vdwg.mxu0
  %v1215 = vadd.f32 %v1171, %v1193
  %v1216 = vadd.f32 %v1172, %v1213
  %v1217 = vxor.u32 %v1215, 2147483648
  %v1218 = vmul.f32 %v1217, 1.442695
  %v1219 = vpow.pop %v1218
  %v1220 = vadd.f32 %v1219, 1.0
  %v1221 = vrcp.pop %v1220
  %v1222 = vmul.f32 %v1220, %v1221
  %v1223 = vsub.f32 1.0, %v1222
  %v1224 = vmul.f32 %v1221, %v1223
  %v1225 = vadd.f32 %v1221, %v1224
  %vm1226 = vweird.f32 %v1220
  %vm1227 = vweird.f32 %v1221
  %vm1228 = vmor %vm1226, %vm1227
  %v1229 = vsel %vm1228, %v1221, %v1225
  %v1230 = vand.u32 2147483647, %v1220
  %vm1231 = vcmp.eq.f32.partialorder %v1230, 8.507059e+37
  %v1232 = vand.u32 %v1220, 2147483648
  %v1233 = vor.u32 1.1754944e-38, %v1232
  %v1234 = vsel %vm1231, %v1233, %v1229
  %v1235 = vmul.f32 1.0, %v1234
  %v1236 = vtanh.pop %v1216
  %v1237 = vxor.u32 %v1216, 2147483648
  %v1238 = vmul.f32 %v1237, 1.442695
  %v1239 = vpow.pop %v1238
  %v1240 = vadd.f32 %v1239, 1.0
  %v1241 = vrcp.pop %v1240
  %v1242 = vmul.f32 %v1240, %v1241
  %v1243 = vsub.f32 1.0, %v1242
  %v1244 = vmul.f32 %v1241, %v1243
  %v1245 = vadd.f32 %v1241, %v1244
  %vm1246 = vweird.f32 %v1240
  %vm1247 = vweird.f32 %v1241
  %vm1248 = vmor %vm1246, %vm1247
  %v1249 = vsel %vm1248, %v1241, %v1245
  %v1250 = vand.u32 2147483647, %v1240
  %vm1251 = vcmp.eq.f32.partialorder %v1250, 8.507059e+37
  %v1252 = vand.u32 %v1240, 2147483648
  %v1253 = vor.u32 1.1754944e-38, %v1252
  %v1254 = vsel %vm1251, %v1253, %v1249
  %v1255 = vmul.f32 1.0, %v1254
  %v1256 = vmul.f32 %v1235, %v1099
  %v1257 = vmul.f32 %v1235, %v1236
  %1259 = vrot.lane.b32.xlu0 %v1257, 64
  %v1260 = vpop.permute.xlu0 %1259
  %v1262 = vadd.f32 %v1256, %v1260
  %v1263 = vtanh.pop %v1262
  %v1264 = vmul.f32 %v1255, %v1263
  %1266 = vrot.lane.b32.xlu0 %v1264, 64
  %v1267 = vpop.permute.xlu0 %1266
  %1270 = vrot.lane.b32.xlu0 %v1170, 96
  %v1271 = vpop.permute.xlu0 %1270
  %v1273 = vsel %vm184, %v1267, %v1271
  %v1275 = vsel %vm295, %v1273, 0
  %1277 = vmatpush.msra.mxu0 0.0
  %1278 = vmatpush.msra.mxu0 0.0
  %1279 = vmatpush.msra.mxu0 0.0
  %1280 = vmatpush.msra.mxu0 0.0
  %1281 = vmatpush.msra.mxu0 %v294
  %1282 = vmatpush.msra.mxu0 %v293
  %1283 = vmatpush.msra.mxu0 %v292
  %1284 = vmatpush.msra.mxu0 %v291
  %1285 = vmatpush.msra.mxu0 %v290
  %1286 = vmatpush.msra.mxu0 %v289
  %1287 = vmatpush.msra.mxu0 %v288
  %1288 = vmatpush.msra.mxu0 %v287
  %1289 = vmatpush.msra.mxu0 %v286
  %1290 = vmatpush.msra.mxu0 %v285
  %1291 = vmatpush.msra.mxu0 %v284
  %1292 = vmatpush.msra.mxu0 %v283
  %1293 = vmatmul.f32.gmra.mxu0 %v1275
  %v1294 = vpop.f32.mrf.mxu0
  %v1295 = vadd.f32 %v164, %v1294
  %1296 = vdwg.mxu0
  %v1297 = vxor.u32 %v1295, 2147483648
  %v1298 = vmul.f32 %v1297, 1.442695
  %v1299 = vpow.pop %v1298
  %v1300 = vadd.f32 %v1299, 1.0
  %v1301 = vrcp.pop %v1300
  %v1302 = vmul.f32 %v1300, %v1301
  %v1303 = vsub.f32 1.0, %v1302
  %v1304 = vmul.f32 %v1301, %v1303
  %v1305 = vadd.f32 %v1301, %v1304
  %vm1306 = vweird.f32 %v1300
  %vm1307 = vweird.f32 %v1301
  %vm1308 = vmor %vm1306, %vm1307
  %v1309 = vsel %vm1308, %v1301, %v1305
  %v1310 = vand.u32 2147483647, %v1300
  %vm1311 = vcmp.eq.f32.partialorder %v1310, 8.507059e+37
  %v1312 = vand.u32 %v1300, 2147483648
  %v1313 = vor.u32 1.1754944e-38, %v1312
  %v1314 = vsel %vm1311, %v1313, %v1309
  %v1315 = vmul.f32 1.0, %v1314
  %v1316 = vtanh.pop %v1295
  %v1317 = vmul.f32 %v1315, %v1164
  %1319 = vrot.lane.b32.xlu0 %v1316, 64
  %v1320 = vpop.permute.xlu0 %1319
  %v1322 = vmul.f32 %v1315, %v1320
  %1324 = vrot.lane.b32.xlu0 %v1322, 32
  %v1325 = vpop.permute.xlu0 %1324
  %v1327 = vadd.f32 %v1317, %v1325
  %v1328 = vtanh.pop %v1327
  %1330 = vrot.lane.b32.xlu0 %v1328, 64
  %v1331 = vpop.permute.xlu0 %1330
  %v1333 = vmul.f32 %v1315, %v1331
  %v1334 = vld [vmem:[#allocation2 + $0x70] sm:$0xff]
  %v1335 = vld [vmem:[#allocation2 + $0x78] sm:$0xff]
  %v1336 = vsel %vm184, %v1267, 0
  %1338 = vmatpush.msra.mxu0 0.0
  %1339 = vmatpush.msra.mxu0 0.0
  %1340 = vmatpush.msra.mxu0 0.0
  %1341 = vmatpush.msra.mxu0 0.0
  %1342 = vmatpush.msra.mxu0 0.0
  %1343 = vmatpush.msra.mxu0 0.0
  %1344 = vmatpush.msra.mxu0 0.0
  %1345 = vmatpush.msra.mxu0 0.0
  %1346 = vmatpush.msra.mxu0 %v182
  %1347 = vmatpush.msra.mxu0 %v180
  %1348 = vmatpush.msra.mxu0 %v178
  %1349 = vmatpush.msra.mxu0 %v176
  %1350 = vmatpush.msra.mxu0 %v174
  %1351 = vmatpush.msra.mxu0 %v172
  %1352 = vmatpush.msra.mxu0 %v170
  %1353 = vmatpush.msra.mxu0 %v168
  %1354 = vmatmul.f32.gmra.mxu0 %v1336
  %v1355 = vpop.f32.mrf.mxu0
  %v1356 = vadd.f32 0.0, %v1355
  %1357 = vdwg.mxu0
  %1358 = vmatpush.msra.mxu0 0.0
  %1359 = vmatpush.msra.mxu0 0.0
  %1360 = vmatpush.msra.mxu0 0.0
  %1361 = vmatpush.msra.mxu0 0.0
  %1362 = vmatpush.msra.mxu0 0.0
  %1363 = vmatpush.msra.mxu0 0.0
  %1364 = vmatpush.msra.mxu0 0.0
  %1365 = vmatpush.msra.mxu0 0.0
  %1366 = vmatpush.msra.mxu0 %v183
  %1367 = vmatpush.msra.mxu0 %v181
  %1368 = vmatpush.msra.mxu0 %v179
  %1369 = vmatpush.msra.mxu0 %v177
  %1370 = vmatpush.msra.mxu0 %v175
  %1371 = vmatpush.msra.mxu0 %v173
  %1372 = vmatpush.msra.mxu0 %v171
  %1373 = vmatpush.msra.mxu0 %v169
  %1374 = vmatmul.f32.gmra.mxu0 %v1336
  %v1375 = vpop.f32.mrf.mxu0
  %v1376 = vadd.f32 0.0, %v1375
  %1377 = vdwg.mxu0
  %v1378 = vadd.f32 %v1334, %v1356
  %v1379 = vadd.f32 %v1335, %v1376
  %v1380 = vxor.u32 %v1378, 2147483648
  %v1381 = vmul.f32 %v1380, 1.442695
  %v1382 = vpow.pop %v1381
  %v1383 = vadd.f32 %v1382, 1.0
  %v1384 = vrcp.pop %v1383
  %v1385 = vmul.f32 %v1383, %v1384
  %v1386 = vsub.f32 1.0, %v1385
  %v1387 = vmul.f32 %v1384, %v1386
  %v1388 = vadd.f32 %v1384, %v1387
  %vm1389 = vweird.f32 %v1383
  %vm1390 = vweird.f32 %v1384
  %vm1391 = vmor %vm1389, %vm1390
  %v1392 = vsel %vm1391, %v1384, %v1388
  %v1393 = vand.u32 2147483647, %v1383
  %vm1394 = vcmp.eq.f32.partialorder %v1393, 8.507059e+37
  %v1395 = vand.u32 %v1383, 2147483648
  %v1396 = vor.u32 1.1754944e-38, %v1395
  %v1397 = vsel %vm1394, %v1396, %v1392
  %v1398 = vmul.f32 1.0, %v1397
  %v1399 = vtanh.pop %v1379
  %v1400 = vxor.u32 %v1379, 2147483648
  %v1401 = vmul.f32 %v1400, 1.442695
  %v1402 = vpow.pop %v1401
  %v1403 = vadd.f32 %v1402, 1.0
  %v1404 = vrcp.pop %v1403
  %v1405 = vmul.f32 %v1403, %v1404
  %v1406 = vsub.f32 1.0, %v1405
  %v1407 = vmul.f32 %v1404, %v1406
  %v1408 = vadd.f32 %v1404, %v1407
  %vm1409 = vweird.f32 %v1403
  %vm1410 = vweird.f32 %v1404
  %vm1411 = vmor %vm1409, %vm1410
  %v1412 = vsel %vm1411, %v1404, %v1408
  %v1413 = vand.u32 2147483647, %v1403
  %vm1414 = vcmp.eq.f32.partialorder %v1413, 8.507059e+37
  %v1415 = vand.u32 %v1403, 2147483648
  %v1416 = vor.u32 1.1754944e-38, %v1415
  %v1417 = vsel %vm1414, %v1416, %v1412
  %v1418 = vmul.f32 1.0, %v1417
  %v1419 = vmul.f32 %v1398, %v1262
  %v1420 = vmul.f32 %v1398, %v1399
  %1422 = vrot.lane.b32.xlu0 %v1420, 64
  %v1423 = vpop.permute.xlu0 %1422
  %v1425 = vadd.f32 %v1419, %v1423
  %v1426 = vtanh.pop %v1425
  %v1427 = vmul.f32 %v1418, %v1426
  %1429 = vrot.lane.b32.xlu0 %v1427, 64
  %v1430 = vpop.permute.xlu0 %1429
  %1433 = vrot.lane.b32.xlu0 %v1333, 96
  %v1434 = vpop.permute.xlu0 %1433
  %v1436 = vsel %vm184, %v1430, %v1434
  %v1438 = vsel %vm295, %v1436, 0
  %1440 = vmatpush.msra.mxu0 0.0
  %1441 = vmatpush.msra.mxu0 0.0
  %1442 = vmatpush.msra.mxu0 0.0
  %1443 = vmatpush.msra.mxu0 0.0
  %1444 = vmatpush.msra.mxu0 %v294
  %1445 = vmatpush.msra.mxu0 %v293
  %1446 = vmatpush.msra.mxu0 %v292
  %1447 = vmatpush.msra.mxu0 %v291
  %1448 = vmatpush.msra.mxu0 %v290
  %1449 = vmatpush.msra.mxu0 %v289
  %1450 = vmatpush.msra.mxu0 %v288
  %1451 = vmatpush.msra.mxu0 %v287
  %1452 = vmatpush.msra.mxu0 %v286
  %1453 = vmatpush.msra.mxu0 %v285
  %1454 = vmatpush.msra.mxu0 %v284
  %1455 = vmatpush.msra.mxu0 %v283
  %1456 = vmatmul.f32.gmra.mxu0 %v1438
  %v1457 = vpop.f32.mrf.mxu0
  %v1458 = vadd.f32 %v164, %v1457
  %1459 = vdwg.mxu0
  %v1460 = vxor.u32 %v1458, 2147483648
  %v1461 = vmul.f32 %v1460, 1.442695
  %v1462 = vpow.pop %v1461
  %v1463 = vadd.f32 %v1462, 1.0
  %v1464 = vrcp.pop %v1463
  %v1465 = vmul.f32 %v1463, %v1464
  %v1466 = vsub.f32 1.0, %v1465
  %v1467 = vmul.f32 %v1464, %v1466
  %v1468 = vadd.f32 %v1464, %v1467
  %vm1469 = vweird.f32 %v1463
  %vm1470 = vweird.f32 %v1464
  %vm1471 = vmor %vm1469, %vm1470
  %v1472 = vsel %vm1471, %v1464, %v1468
  %v1473 = vand.u32 2147483647, %v1463
  %vm1474 = vcmp.eq.f32.partialorder %v1473, 8.507059e+37
  %v1475 = vand.u32 %v1463, 2147483648
  %v1476 = vor.u32 1.1754944e-38, %v1475
  %v1477 = vsel %vm1474, %v1476, %v1472
  %v1478 = vmul.f32 1.0, %v1477
  %v1479 = vtanh.pop %v1458
  %v1480 = vmul.f32 %v1478, %v1327
  %1482 = vrot.lane.b32.xlu0 %v1479, 64
  %v1483 = vpop.permute.xlu0 %1482
  %v1485 = vmul.f32 %v1478, %v1483
  %1487 = vrot.lane.b32.xlu0 %v1485, 32
  %v1488 = vpop.permute.xlu0 %1487
  %v1490 = vadd.f32 %v1480, %v1488
  %v1491 = vtanh.pop %v1490
  %1493 = vrot.lane.b32.xlu0 %v1491, 64
  %v1494 = vpop.permute.xlu0 %1493
  %v1496 = vmul.f32 %v1478, %v1494
  %1498 = vrot.lane.b32.xlu0 %v1496, 32
  %v1499 = vpop.permute.xlu0 %1498
  %vm1501 = vcmask 261120
  %1502 = vst.msk [vmem:[%s6] sm:$0xff] %vm1501, %v1499
  // Predicated region
  $region26: #{lstm_model_forward.1} parent=0 // pred_check
    _
  $region27: #{lstm_model_forward.1} parent=0 // pred_check_branch
    %1504 = sbr.rel (0) target = $region29
  $region28: #{lstm_model_forward.1} parent=0 // pred_region
    _
  $region29: #{lstm_model_forward.1} parent=0 // pred_fallthru
    _
  // Predicated region
  $region30: #{lstm_model_forward.1} parent=0 // pred_check
    _
  $region31: #{lstm_model_forward.1} parent=0 // pred_check_branch
    %1506 = sbr.rel (0) target = $region33
  $region32: #{lstm_model_forward.1} parent=0 // pred_region
    _
  $region33: #{lstm_model_forward.1} parent=0 // pred_fallthru
    _

</llo_original>
